<compile_context>
chip_gen: v7x
topology: tpu7x:2x2x1
jax: 0.10.0
libtpu: 0.0.40
codegen_flags: <defaults>
</compile_context>

<pallas_src>
import functools
import math

import jax
import jax.numpy as jnp
from jax.experimental import pallas as pl
from jax.experimental.pallas import tpu as pltpu


def _round_up(a, b):
    return (a + b - 1) // b * b


def _ffn_kernel(x_ref, w13_ref, w2_ref, o_ref, acc_ref, *, tile_h):
    # grid = (M tiles [parallel], H tiles [arbitrary, reduction -> last axis]).
    k = pl.program_id(1)

    @pl.when(k == 0)
    def _():
        acc_ref[...] = jnp.zeros_like(acc_ref)

    x = x_ref[...]                                                    # (tm, D) bf16
    # Fused up-projection: one MXU pass computes [h1 | h3] for this H chunk.
    h = jnp.dot(x, w13_ref[...], preferred_element_type=jnp.float32)  # (tm, 2*th) f32
    h1 = h[:, :tile_h]
    h3 = h[:, tile_h:]
    gated = (h1 * jax.nn.sigmoid(h1)) * h3                            # SiLU(h1)*h3, f32
    acc_ref[...] += jnp.dot(gated.astype(w2_ref.dtype), w2_ref[...],
                            preferred_element_type=jnp.float32)       # (tm, D) f32

    @pl.when(k == pl.num_programs(1) - 1)
    def _():
        o_ref[...] = acc_ref[...].astype(o_ref.dtype)


def prepare_ffn_weights(w1, w2, w3, *, tile_h=512, compute_dtype=jnp.bfloat16):
    """One-time weight preparation (do at load time, cache the result).

    w1, w3 : (H, D) PyTorch nn.Linear layout (out, in)
    w2     : (D, H)
    Returns:
      w13 : (D, 2H) bf16, per-tile_h-chunk interleaved [w1_k | w3_k | w1_k+1 | ...]
      w2t : (H, D)  bf16
    """
    H, D = w1.shape
    assert H % 256 == 0, "hidden_dim is a multiple of 256 by module construction"
    th = math.gcd(H, tile_h)
    g = H // th
    w1t = w1.T.reshape(D, g, th)
    w3t = w3.T.reshape(D, g, th)
    w13 = jnp.concatenate([w1t, w3t], axis=2).reshape(D, 2 * H)
    w2t = w2.T
    return w13.astype(compute_dtype), w2t.astype(compute_dtype)


def feed_forward(x, w13, w2t, *, tile_m=256, tile_h=512,
                 compute_dtype=jnp.bfloat16):
    """SwiGLU FFN: w2(silu(w1(x)) * w3(x)).

    x   : (B, T, D) activations
    w13 : (D, 2H) fused up-projection weights from prepare_ffn_weights (same tile_h!)
    w2t : (H, D)  transposed down-projection weights
    returns (B, T, D) in x.dtype
    """
    B, T, D = x.shape
    H = w2t.shape[0]
    assert w13.shape == (D, 2 * H)
    assert D % 128 == 0, "n_embd must be a multiple of 128 (lane width)"
    assert tile_m % 128 == 0 and tile_h % 256 == 0

    th = math.gcd(H, tile_h)                  # multiple of 256, divides H
    M = B * T
    tm = min(tile_m, _round_up(M, 128))       # pad small M up to the MXU granule
    M_pad = _round_up(M, tm)

    xm = x.reshape(M, D).astype(compute_dtype)
    if M_pad != M:
        xm = jnp.pad(xm, ((0, M_pad - M), (0, 0)))

    grid = (M_pad // tm, H // th)

    itemsize = jnp.dtype(compute_dtype).itemsize
    cost = pl.CostEstimate(
        flops=6 * M_pad * H * D,
        transcendentals=M_pad * H,
        bytes_accessed=(M_pad * D * itemsize          # x
                        + 3 * H * D * itemsize        # w1, w3, w2
                        + M_pad * D * x.dtype.itemsize),  # out
    )

    out = pl.pallas_call(
        functools.partial(_ffn_kernel, tile_h=th),
        out_shape=jax.ShapeDtypeStruct((M_pad, D), x.dtype),
        grid_spec=pltpu.PrefetchScalarGridSpec(
            num_scalar_prefetch=0,
            grid=grid,
            in_specs=[
                pl.BlockSpec((tm, D), lambda m, k: (m, 0)),       # x token tile
                pl.BlockSpec((D, 2 * th), lambda m, k: (0, k)),   # fused [w1|w3] chunk
                pl.BlockSpec((th, D), lambda m, k: (k, 0)),       # w2^T chunk
            ],
            out_specs=pl.BlockSpec((tm, D), lambda m, k: (m, 0)),
            scratch_shapes=[pltpu.VMEM((tm, D), jnp.float32)],
        ),
        compiler_params=pltpu.CompilerParams(
            dimension_semantics=("parallel", "arbitrary"),
            vmem_limit_bytes=48 * 1024 * 1024,
        ),
        cost_estimate=cost,
    )(xm, w13, w2t)

    return out[:M].reshape(B, T, D)


def _reference(x, w1, w2, w3):
    h1 = jnp.einsum("btd,hd->bth", x, w1)
    h3 = jnp.einsum("btd,hd->bth", x, w3)
    g = (h1 * jax.nn.sigmoid(h1)) * h3
    return jnp.einsum("bth,dh->btd", g, w2)


if __name__ == "__main__":
    # config.n_embd = 128 -> hidden_dim = int(2/3 * 4 * 128) = 341 -> round to 512
    n_embd = 128
    hidden_dim = int(2 / 3 * 4 * n_embd)
    hidden_dim = 256 * ((hidden_dim + 256 - 1) // 256)

    B, T = 2, 8

    key = jax.random.PRNGKey(0)
    kx, k1, k2, k3 = jax.random.split(key, 4)
    x = jax.random.normal(kx, (B, T, n_embd), dtype=jnp.float32)
    # Deterministic synthetic weights in PyTorch nn.Linear layout (out, in).
    w1 = jax.random.normal(k1, (hidden_dim, n_embd), dtype=jnp.float32) * 0.02
    w2 = jax.random.normal(k2, (n_embd, hidden_dim), dtype=jnp.float32) * 0.02
    w3 = jax.random.normal(k3, (hidden_dim, n_embd), dtype=jnp.float32) * 0.02

    # One-time weight prep (transpose + fuse + bf16 cast) outside the hot path.
    w13, w2t = prepare_ffn_weights(w1, w2, w3, tile_h=512)

    fwd = jax.jit(functools.partial(feed_forward, tile_m=256, tile_h=512))
    y = fwd(x, w13, w2t)
    y = jax.block_until_ready(y)

    y_ref = _reference(x, w1, w2, w3)
    assert y.shape == (B, T, n_embd)
    # bf16 matmul inputs with f32 accumulation -> widened tolerance vs f32 ref.
    assert jnp.allclose(y, y_ref, atol=2e-2, rtol=2e-2), "mismatch vs reference"

    print("KERNEL_OK")
</pallas_src>

<mosaic_0001>
module attributes {stable_mosaic.version = 11 : i64} {
  func.func @_ffn_kernel(%arg0: i32, %arg1: i32, %arg2: memref<128x128xbf16, #tpu.memory_space<vmem>>, %arg3: memref<128x1024xbf16, #tpu.memory_space<vmem>>, %arg4: memref<512x128xbf16, #tpu.memory_space<vmem>>, %arg5: memref<128x128xf32, #tpu.memory_space<vmem>>, %arg6: memref<128x128xf32, #tpu.memory_space<vmem>>) attributes {dimension_semantics = [#tpu.dimension_semantics<parallel>, #tpu.dimension_semantics<arbitrary>], iteration_bounds = array<i64: 1, 1>, scalar_prefetch = 0 : i64, scratch_operands = 1 : i64, tpu.core_type = #tpu.core_type<tc>, window_params = [{transform_indices = @transform_0, window_bounds = array<i64: 128, 128>}, {transform_indices = @transform_1, window_bounds = array<i64: 128, 1024>}, {transform_indices = @transform_2, window_bounds = array<i64: 512, 128>}, {transform_indices = @transform_3, window_bounds = array<i64: 128, 128>}]} {
    %c0_i32 = arith.constant 0 : i32
    %0 = arith.cmpi eq, %arg1, %c0_i32 : i32
    %1 = arith.extui %0 : i1 to i32
    %c0_i32_0 = arith.constant 0 : i32
    %2 = arith.cmpi ne, %1, %c0_i32_0 : i32
    scf.if %2 {
      %cst_14 = arith.constant 0.000000e+00 : f32
      %24 = vector.broadcast %cst_14 : f32 to vector<128x128xf32>
      %c0_15 = arith.constant 0 : index
      %c0_16 = arith.constant 0 : index
      %25 = vector.load %arg6[%c0_15, %c0_16] : memref<128x128xf32, #tpu.memory_space<vmem>>, vector<128x128xf32>
      tpu.vector_store %arg6[%c0_15, %c0_16], %24 {strides = array<i32>} : memref<128x128xf32, #tpu.memory_space<vmem>>, vector<128x128xf32>,
    } else {
    }
    %c0 = arith.constant 0 : index
    %c0_1 = arith.constant 0 : index
    %3 = vector.load %arg2[%c0, %c0_1] : memref<128x128xbf16, #tpu.memory_space<vmem>>, vector<128x128xbf16>
    %c0_2 = arith.constant 0 : index
    %c0_3 = arith.constant 0 : index
    %4 = vector.load %arg3[%c0_2, %c0_3] : memref<128x1024xbf16, #tpu.memory_space<vmem>>, vector<128x1024xbf16>
    %cst = arith.constant dense<0.000000e+00> : vector<128x1024xf32>
    %5 = tpu.matmul %3, %4, %cst {dimension_numbers = #tpu.dot_dimension_numbers<[1], [0], [0], [1], [0, 0, 1, 1], [], []>} : vector<128x128xbf16>, vector<128x1024xbf16>, vector<128x1024xf32> -> vector<128x1024xf32>
    %6 = vector.extract_strided_slice %5 {offsets = [0, 0], sizes = [128, 512], strides = [1, 1]} : vector<128x1024xf32> to vector<128x512xf32>
    %7 = vector.extract_strided_slice %5 {offsets = [0, 512], sizes = [128, 512], strides = [1, 1]} : vector<128x1024xf32> to vector<128x512xf32>
    %8 = arith.negf %6 : vector<128x512xf32>
    %9 = math.exp %8 : vector<128x512xf32>
    %cst_4 = arith.constant 1.000000e+00 : f32
    %10 = vector.broadcast %cst_4 : f32 to vector<128x512xf32>
    %11 = arith.addf %10, %9 : vector<128x512xf32>
    %12 = arith.divf %10, %11 : vector<128x512xf32>
    %13 = arith.mulf %6, %12 : vector<128x512xf32>
    %14 = arith.mulf %13, %7 : vector<128x512xf32>
    %c0_5 = arith.constant 0 : index
    %c0_6 = arith.constant 0 : index
    %15 = vector.load %arg6[%c0_5, %c0_6] : memref<128x128xf32, #tpu.memory_space<vmem>>, vector<128x128xf32>
    %16 = arith.truncf %14 : vector<128x512xf32> to vector<128x512xbf16>
    %c0_7 = arith.constant 0 : index
    %c0_8 = arith.constant 0 : index
    %17 = vector.load %arg4[%c0_7, %c0_8] : memref<512x128xbf16, #tpu.memory_space<vmem>>, vector<512x128xbf16>
    %cst_9 = arith.constant dense<0.000000e+00> : vector<128x128xf32>
    %18 = tpu.matmul %16, %17, %cst_9 {dimension_numbers = #tpu.dot_dimension_numbers<[1], [0], [0], [1], [0, 0, 1, 1], [], []>} : vector<128x512xbf16>, vector<512x128xbf16>, vector<128x128xf32> -> vector<128x128xf32>
    %19 = arith.addf %15, %18 : vector<128x128xf32>
    %c0_10 = arith.constant 0 : index
    %c0_11 = arith.constant 0 : index
    %20 = vector.load %arg6[%c0_10, %c0_11] : memref<128x128xf32, #tpu.memory_space<vmem>>, vector<128x128xf32>
    tpu.vector_store %arg6[%c0_10, %c0_11], %19 {strides = array<i32>} : memref<128x128xf32, #tpu.memory_space<vmem>>, vector<128x128xf32>,
    %c0_i32_12 = arith.constant 0 : i32
    %21 = arith.cmpi eq, %arg1, %c0_i32_12 : i32
    %22 = arith.extui %21 : i1 to i32
    %c0_i32_13 = arith.constant 0 : i32
    %23 = arith.cmpi ne, %22, %c0_i32_13 : i32
    scf.if %23 {
      %c0_14 = arith.constant 0 : index
      %c0_15 = arith.constant 0 : index
      %24 = vector.load %arg6[%c0_14, %c0_15] : memref<128x128xf32, #tpu.memory_space<vmem>>, vector<128x128xf32>
      %c0_16 = arith.constant 0 : index
      %c0_17 = arith.constant 0 : index
      %25 = vector.load %arg5[%c0_16, %c0_17] : memref<128x128xf32, #tpu.memory_space<vmem>>, vector<128x128xf32>
      tpu.vector_store %arg5[%c0_16, %c0_17], %24 {strides = array<i32>} : memref<128x128xf32, #tpu.memory_space<vmem>>, vector<128x128xf32>,
    } else {
    }
    return
  }
  func.func @transform_0(%arg0: i32, %arg1: i32) -> (i32, i32) {
    %c0_i32 = arith.constant 0 : i32
    %c0_i32_0 = arith.constant 0 : i32
    return %arg0, %c0_i32 : i32, i32
  }
  func.func @transform_1(%arg0: i32, %arg1: i32) -> (i32, i32) {
    %c0_i32 = arith.constant 0 : i32
    %c0_i32_0 = arith.constant 0 : i32
    return %c0_i32, %arg1 : i32, i32
  }
  func.func @transform_2(%arg0: i32, %arg1: i32) -> (i32, i32) {
    %c0_i32 = arith.constant 0 : i32
    %c0_i32_0 = arith.constant 0 : i32
    return %arg1, %c0_i32 : i32, i32
  }
  func.func @transform_3(%arg0: i32, %arg1: i32) -> (i32, i32) {
    %c0_i32 = arith.constant 0 : i32
    %c0_i32_0 = arith.constant 0 : i32
    return %arg0, %c0_i32 : i32, i32
  }
}

</mosaic_0001>

<llo_original>
// kernel: feed_forward.1
$region0: #{feed_forward.1}
  #allocation0 [shape = 'u32[]', space=smem, size = 0x4, offset = 0x4, fixed_abs, tag = 'smem constant byte address 0x4 - core index']
  #allocation1 [shape = 'u32[144,128]{1,0:T(1,128)}', space=vmem, size = 0x12000, scoped, tag = 'internal scratch']
  #allocation2 [shape = 'f32[128,128]{1,0:T(8,128)}', space=vmem, size = 0x10000, scoped, tag = 'scratch operand']
  %s0 = inlined_call_operand.vmem [shape: bf16[128,128], index: 0, kind: input, shape index: {}]
  %s1 = inlined_call_operand.hbm [shape: bf16[128,1024], index: 1, kind: input, shape index: {}]
  %s2 = inlined_call_operand.hbm [shape: bf16[512,128], index: 2, kind: input, shape index: {}]
  %s3 = inlined_call_operand.vmem [shape: f32[128,128], index: 3, kind: output, shape index: {}]
  %s4 = sld [smem:[#allocation0]]
  $region38: #{feed_forward.1} parent=0
    _
  %s6 = ssub.s32 1, %s4
  %s7 = scalar_select 0, %s6, %s4
  $region1: #{feed_forward.1} parent=0
    #allocation3 [shape = 'u8[262144]{0}', space=vmem, size = 0x40000, scoped, tag = 'input window, operand 1, single buffered']
    #allocation4 [shape = 's32[1]{0}', space=sflag, size = 0x4, scoped, tag = 'scoped memory for feed_forward.1']
    #allocation5 [shape = 'u8[131072]{0}', space=vmem, size = 0x20000, scoped, tag = 'input window, operand 2, single buffered']
    #allocation6 [shape = 's32[1]{0}', space=sflag, size = 0x4, scoped, tag = 'scoped memory for feed_forward.1']
    %8 = vsyncpa [#allocation4], 0
    %9 = vsyncpa [#allocation6], 0
    // Predicated region
    $region2: #{feed_forward.1} parent=1 // pred_check
      _
    $region3: #{feed_forward.1} parent=1 // pred_check_branch
      %11 = sbr.rel (0) target = $region5
    $region4: #{feed_forward.1} parent=1 // pred_region
      _
    $region5: #{feed_forward.1} parent=1 // pred_fallthru
      _
    // Predicated region
    $region6: #{feed_forward.1} parent=1 // pred_check
      _
    $region7: #{feed_forward.1} parent=1 // pred_check_branch
      %13 = sbr.rel (0) target = $region9
    $region8: #{feed_forward.1} parent=1 // pred_region
      %s15 = ssub.s32 8192, 8192
      %16 = vsyncadd [#allocation4], %s15
      %s17 = sshll.u32 [#allocation3], 4
      %s18 = int_to_ptr.vmem [resolvable:$true] %s17
      %23 = dma.hbm_to_vmem [thread:$0]  %s1, 8192, %s18, [#allocation4], 512, 512, 32
    $region9: #{feed_forward.1} parent=1 // pred_fallthru
      _
    // Predicated region
    $region10: #{feed_forward.1} parent=1 // pred_check
      _
    $region11: #{feed_forward.1} parent=1 // pred_check_branch
      %25 = sbr.rel (0) target = $region13
    $region12: #{feed_forward.1} parent=1 // pred_region
      %s27 = ssub.s32 4096, 4096
      %28 = vsyncadd [#allocation6], %s27
      %s29 = sshll.u32 [#allocation5], 4
      %s30 = int_to_ptr.vmem [resolvable:$true] %s29
      %35 = dma.hbm_to_vmem [thread:$0]  %s2, 4096, %s30, [#allocation6], 64, 64, 4
    $region13: #{feed_forward.1} parent=1 // pred_fallthru
      _
    // Predicated region
    $region14: #{feed_forward.1} parent=1 // pred_check
      _
    $region15: #{feed_forward.1} parent=1 // pred_check_branch
      %37 = sbr.rel (0) target = $region17
    $region16: #{feed_forward.1} parent=1 // pred_region
      %38 = dma.done [#allocation4], 8192
    $region17: #{feed_forward.1} parent=1 // pred_fallthru
      _
    // Predicated region
    $region18: #{feed_forward.1} parent=1 // pred_check
      _
    $region19: #{feed_forward.1} parent=1 // pred_check_branch
      %40 = sbr.rel (0) target = $region21
    $region20: #{feed_forward.1} parent=1 // pred_region
      %41 = dma.done [#allocation6], 4096
    $region21: #{feed_forward.1} parent=1 // pred_fallthru
      _
    %p43 = scmp.eq.s32.totalorder 0, 0
    // Predicated region
    $region22: #{feed_forward.1} parent=1 // pred_check
      %p44 = pneg %p43
    $region23: #{feed_forward.1} parent=1 // pred_check_branch
      %46 = sbr.rel (%p44) target = $region25
    $region24: #{feed_forward.1} parent=1 // pred_region
      %47 = vst [vmem:[#allocation2] sm:$0xff] 0.0
      %48 = vst [vmem:[#allocation2 + $0x8] sm:$0xff] 0.0
      %49 = vst [vmem:[#allocation2 + $0x10] sm:$0xff] 0.0
      %50 = vst [vmem:[#allocation2 + $0x18] sm:$0xff] 0.0
      %51 = vst [vmem:[#allocation2 + $0x20] sm:$0xff] 0.0
      %52 = vst [vmem:[#allocation2 + $0x28] sm:$0xff] 0.0
      %53 = vst [vmem:[#allocation2 + $0x30] sm:$0xff] 0.0
      %54 = vst [vmem:[#allocation2 + $0x38] sm:$0xff] 0.0
      %55 = vst [vmem:[#allocation2 + $0x40] sm:$0xff] 0.0
      %56 = vst [vmem:[#allocation2 + $0x48] sm:$0xff] 0.0
      %57 = vst [vmem:[#allocation2 + $0x50] sm:$0xff] 0.0
      %58 = vst [vmem:[#allocation2 + $0x58] sm:$0xff] 0.0
      %59 = vst [vmem:[#allocation2 + $0x60] sm:$0xff] 0.0
      %60 = vst [vmem:[#allocation2 + $0x68] sm:$0xff] 0.0
      %61 = vst [vmem:[#allocation2 + $0x70] sm:$0xff] 0.0
      %62 = vst [vmem:[#allocation2 + $0x78] sm:$0xff] 0.0
    $region25: #{feed_forward.1} parent=1 // pred_fallthru
      _
    %v63 = vld [vmem:[%s0] sm:$0xf]
    %v64 = vld [vmem:[%s0 + $0x4] sm:$0xf]
    %v65 = vld [vmem:[%s0 + $0x8] sm:$0xf]
    %v66 = vld [vmem:[%s0 + $0xc] sm:$0xf]
    %v67 = vld [vmem:[%s0 + $0x10] sm:$0xf]
    %v68 = vld [vmem:[%s0 + $0x14] sm:$0xf]
    %v69 = vld [vmem:[%s0 + $0x18] sm:$0xf]
    %v70 = vld [vmem:[%s0 + $0x1c] sm:$0xf]
    %v71 = vld [vmem:[%s0 + $0x20] sm:$0xf]
    %v72 = vld [vmem:[%s0 + $0x24] sm:$0xf]
    %v73 = vld [vmem:[%s0 + $0x28] sm:$0xf]
    %v74 = vld [vmem:[%s0 + $0x2c] sm:$0xf]
    %v75 = vld [vmem:[%s0 + $0x30] sm:$0xf]
    %v76 = vld [vmem:[%s0 + $0x34] sm:$0xf]
    %v77 = vld [vmem:[%s0 + $0x38] sm:$0xf]
    %v78 = vld [vmem:[%s0 + $0x3c] sm:$0xf]
    %v79 = vld [vmem:[#allocation3] sm:$0xff]
    %v80 = vld [vmem:[#allocation3 + $0x8] sm:$0xff]
    %v81 = vld [vmem:[#allocation3 + $0x10] sm:$0xff]
    %v82 = vld [vmem:[#allocation3 + $0x18] sm:$0xff]
    %v83 = vld [vmem:[#allocation3 + $0x20] sm:$0xff]
    %v84 = vld [vmem:[#allocation3 + $0x28] sm:$0xff]
    %v85 = vld [vmem:[#allocation3 + $0x30] sm:$0xff]
    %v86 = vld [vmem:[#allocation3 + $0x38] sm:$0xff]
    %v87 = vld [vmem:[#allocation3 + $0x40] sm:$0xff]
    %v88 = vld [vmem:[#allocation3 + $0x48] sm:$0xff]
    %v89 = vld [vmem:[#allocation3 + $0x50] sm:$0xff]
    %v90 = vld [vmem:[#allocation3 + $0x58] sm:$0xff]
    %v91 = vld [vmem:[#allocation3 + $0x60] sm:$0xff]
    %v92 = vld [vmem:[#allocation3 + $0x68] sm:$0xff]
    %v93 = vld [vmem:[#allocation3 + $0x70] sm:$0xff]
    %v94 = vld [vmem:[#allocation3 + $0x78] sm:$0xff]
    %v95 = vld [vmem:[#allocation3 + $0x80] sm:$0xff]
    %v96 = vld [vmem:[#allocation3 + $0x88] sm:$0xff]
    %v97 = vld [vmem:[#allocation3 + $0x90] sm:$0xff]
    %v98 = vld [vmem:[#allocation3 + $0x98] sm:$0xff]
    %v99 = vld [vmem:[#allocation3 + $0xa0] sm:$0xff]
    %v100 = vld [vmem:[#allocation3 + $0xa8] sm:$0xff]
    %v101 = vld [vmem:[#allocation3 + $0xb0] sm:$0xff]
    %v102 = vld [vmem:[#allocation3 + $0xb8] sm:$0xff]
    %v103 = vld [vmem:[#allocation3 + $0xc0] sm:$0xff]
    %v104 = vld [vmem:[#allocation3 + $0xc8] sm:$0xff]
    %v105 = vld [vmem:[#allocation3 + $0xd0] sm:$0xff]
    %v106 = vld [vmem:[#allocation3 + $0xd8] sm:$0xff]
    %v107 = vld [vmem:[#allocation3 + $0xe0] sm:$0xff]
    %v108 = vld [vmem:[#allocation3 + $0xe8] sm:$0xff]
    %v109 = vld [vmem:[#allocation3 + $0xf0] sm:$0xff]
    %v110 = vld [vmem:[#allocation3 + $0xf8] sm:$0xff]
    %v111 = vld [vmem:[#allocation3 + $0x100] sm:$0xff]
    %v112 = vld [vmem:[#allocation3 + $0x108] sm:$0xff]
    %v113 = vld [vmem:[#allocation3 + $0x110] sm:$0xff]
    %v114 = vld [vmem:[#allocation3 + $0x118] sm:$0xff]
    %v115 = vld [vmem:[#allocation3 + $0x120] sm:$0xff]
    %v116 = vld [vmem:[#allocation3 + $0x128] sm:$0xff]
    %v117 = vld [vmem:[#allocation3 + $0x130] sm:$0xff]
    %v118 = vld [vmem:[#allocation3 + $0x138] sm:$0xff]
    %v119 = vld [vmem:[#allocation3 + $0x140] sm:$0xff]
    %v120 = vld [vmem:[#allocation3 + $0x148] sm:$0xff]
    %v121 = vld [vmem:[#allocation3 + $0x150] sm:$0xff]
    %v122 = vld [vmem:[#allocation3 + $0x158] sm:$0xff]
    %v123 = vld [vmem:[#allocation3 + $0x160] sm:$0xff]
    %v124 = vld [vmem:[#allocation3 + $0x168] sm:$0xff]
    %v125 = vld [vmem:[#allocation3 + $0x170] sm:$0xff]
    %v126 = vld [vmem:[#allocation3 + $0x178] sm:$0xff]
    %v127 = vld [vmem:[#allocation3 + $0x180] sm:$0xff]
    %v128 = vld [vmem:[#allocation3 + $0x188] sm:$0xff]
    %v129 = vld [vmem:[#allocation3 + $0x190] sm:$0xff]
    %v130 = vld [vmem:[#allocation3 + $0x198] sm:$0xff]
    %v131 = vld [vmem:[#allocation3 + $0x1a0] sm:$0xff]
    %v132 = vld [vmem:[#allocation3 + $0x1a8] sm:$0xff]
    %v133 = vld [vmem:[#allocation3 + $0x1b0] sm:$0xff]
    %v134 = vld [vmem:[#allocation3 + $0x1b8] sm:$0xff]
    %v135 = vld [vmem:[#allocation3 + $0x1c0] sm:$0xff]
    %v136 = vld [vmem:[#allocation3 + $0x1c8] sm:$0xff]
    %v137 = vld [vmem:[#allocation3 + $0x1d0] sm:$0xff]
    %v138 = vld [vmem:[#allocation3 + $0x1d8] sm:$0xff]
    %v139 = vld [vmem:[#allocation3 + $0x1e0] sm:$0xff]
    %v140 = vld [vmem:[#allocation3 + $0x1e8] sm:$0xff]
    %v141 = vld [vmem:[#allocation3 + $0x1f0] sm:$0xff]
    %v142 = vld [vmem:[#allocation3 + $0x1f8] sm:$0xff]
    %v159 = vunpack.c.l.b16 %v63
    %v160 = vunpack.c.l.b16 %v64
    %v161 = vunpack.c.l.b16 %v65
    %v162 = vunpack.c.l.b16 %v66
    %v163 = vunpack.c.l.b16 %v67
    %v164 = vunpack.c.l.b16 %v68
    %v165 = vunpack.c.l.b16 %v69
    %v166 = vunpack.c.l.b16 %v70
    %v167 = vunpack.c.l.b16 %v71
    %v168 = vunpack.c.l.b16 %v72
    %v169 = vunpack.c.l.b16 %v73
    %v170 = vunpack.c.l.b16 %v74
    %v171 = vunpack.c.l.b16 %v75
    %v172 = vunpack.c.l.b16 %v76
    %v173 = vunpack.c.l.b16 %v77
    %v174 = vunpack.c.l.b16 %v78
    %v175 = vpack.c.b16 %v160, %v159
    %v176 = vpack.c.b16 %v162, %v161
    %v177 = vpack.c.b16 %v164, %v163
    %v178 = vpack.c.b16 %v166, %v165
    %v179 = vpack.c.b16 %v168, %v167
    %v180 = vpack.c.b16 %v170, %v169
    %v181 = vpack.c.b16 %v172, %v171
    %v182 = vpack.c.b16 %v174, %v173
    %v255 = vunpack.c.l.b16 %v79
    %v256 = vunpack.c.h.b16 %v79
    %v257 = vunpack.c.l.b16 %v80
    %v258 = vunpack.c.h.b16 %v80
    %v259 = vunpack.c.l.b16 %v81
    %v260 = vunpack.c.h.b16 %v81
    %v261 = vunpack.c.l.b16 %v82
    %v262 = vunpack.c.h.b16 %v82
    %v263 = vunpack.c.l.b16 %v83
    %v264 = vunpack.c.h.b16 %v83
    %v265 = vunpack.c.l.b16 %v84
    %v266 = vunpack.c.h.b16 %v84
    %v267 = vunpack.c.l.b16 %v85
    %v268 = vunpack.c.h.b16 %v85
    %v269 = vunpack.c.l.b16 %v86
    %v270 = vunpack.c.h.b16 %v86
    %v271 = vunpack.c.l.b16 %v87
    %v272 = vunpack.c.h.b16 %v87
    %v273 = vunpack.c.l.b16 %v88
    %v274 = vunpack.c.h.b16 %v88
    %v275 = vunpack.c.l.b16 %v89
    %v276 = vunpack.c.h.b16 %v89
    %v277 = vunpack.c.l.b16 %v90
    %v278 = vunpack.c.h.b16 %v90
    %v279 = vunpack.c.l.b16 %v91
    %v280 = vunpack.c.h.b16 %v91
    %v281 = vunpack.c.l.b16 %v92
    %v282 = vunpack.c.h.b16 %v92
    %v283 = vunpack.c.l.b16 %v93
    %v284 = vunpack.c.h.b16 %v93
    %v285 = vunpack.c.l.b16 %v94
    %v286 = vunpack.c.h.b16 %v94
    %v287 = vunpack.c.l.b16 %v95
    %v288 = vunpack.c.h.b16 %v95
    %v289 = vunpack.c.l.b16 %v96
    %v290 = vunpack.c.h.b16 %v96
    %v291 = vunpack.c.l.b16 %v97
    %v292 = vunpack.c.h.b16 %v97
    %v293 = vunpack.c.l.b16 %v98
    %v294 = vunpack.c.h.b16 %v98
    %v295 = vunpack.c.l.b16 %v99
    %v296 = vunpack.c.h.b16 %v99
    %v297 = vunpack.c.l.b16 %v100
    %v298 = vunpack.c.h.b16 %v100
    %v299 = vunpack.c.l.b16 %v101
    %v300 = vunpack.c.h.b16 %v101
    %v301 = vunpack.c.l.b16 %v102
    %v302 = vunpack.c.h.b16 %v102
    %v303 = vunpack.c.l.b16 %v103
    %v304 = vunpack.c.h.b16 %v103
    %v305 = vunpack.c.l.b16 %v104
    %v306 = vunpack.c.h.b16 %v104
    %v307 = vunpack.c.l.b16 %v105
    %v308 = vunpack.c.h.b16 %v105
    %v309 = vunpack.c.l.b16 %v106
    %v310 = vunpack.c.h.b16 %v106
    %v311 = vunpack.c.l.b16 %v107
    %v312 = vunpack.c.h.b16 %v107
    %v313 = vunpack.c.l.b16 %v108
    %v314 = vunpack.c.h.b16 %v108
    %v315 = vunpack.c.l.b16 %v109
    %v316 = vunpack.c.h.b16 %v109
    %v317 = vunpack.c.l.b16 %v110
    %v318 = vunpack.c.h.b16 %v110
    %v319 = vunpack.c.l.b16 %v111
    %v320 = vunpack.c.h.b16 %v111
    %v321 = vunpack.c.l.b16 %v112
    %v322 = vunpack.c.h.b16 %v112
    %v323 = vunpack.c.l.b16 %v113
    %v324 = vunpack.c.h.b16 %v113
    %v325 = vunpack.c.l.b16 %v114
    %v326 = vunpack.c.h.b16 %v114
    %v327 = vunpack.c.l.b16 %v115
    %v328 = vunpack.c.h.b16 %v115
    %v329 = vunpack.c.l.b16 %v116
    %v330 = vunpack.c.h.b16 %v116
    %v331 = vunpack.c.l.b16 %v117
    %v332 = vunpack.c.h.b16 %v117
    %v333 = vunpack.c.l.b16 %v118
    %v334 = vunpack.c.h.b16 %v118
    %v335 = vunpack.c.l.b16 %v119
    %v336 = vunpack.c.h.b16 %v119
    %v337 = vunpack.c.l.b16 %v120
    %v338 = vunpack.c.h.b16 %v120
    %v339 = vunpack.c.l.b16 %v121
    %v340 = vunpack.c.h.b16 %v121
    %v341 = vunpack.c.l.b16 %v122
    %v342 = vunpack.c.h.b16 %v122
    %v343 = vunpack.c.l.b16 %v123
    %v344 = vunpack.c.h.b16 %v123
    %v345 = vunpack.c.l.b16 %v124
    %v346 = vunpack.c.h.b16 %v124
    %v347 = vunpack.c.l.b16 %v125
    %v348 = vunpack.c.h.b16 %v125
    %v349 = vunpack.c.l.b16 %v126
    %v350 = vunpack.c.h.b16 %v126
    %v351 = vunpack.c.l.b16 %v127
    %v352 = vunpack.c.h.b16 %v127
    %v353 = vunpack.c.l.b16 %v128
    %v354 = vunpack.c.h.b16 %v128
    %v355 = vunpack.c.l.b16 %v129
    %v356 = vunpack.c.h.b16 %v129
    %v357 = vunpack.c.l.b16 %v130
    %v358 = vunpack.c.h.b16 %v130
    %v359 = vunpack.c.l.b16 %v131
    %v360 = vunpack.c.h.b16 %v131
    %v361 = vunpack.c.l.b16 %v132
    %v362 = vunpack.c.h.b16 %v132
    %v363 = vunpack.c.l.b16 %v133
    %v364 = vunpack.c.h.b16 %v133
    %v365 = vunpack.c.l.b16 %v134
    %v366 = vunpack.c.h.b16 %v134
    %v367 = vunpack.c.l.b16 %v135
    %v368 = vunpack.c.h.b16 %v135
    %v369 = vunpack.c.l.b16 %v136
    %v370 = vunpack.c.h.b16 %v136
    %v371 = vunpack.c.l.b16 %v137
    %v372 = vunpack.c.h.b16 %v137
    %v373 = vunpack.c.l.b16 %v138
    %v374 = vunpack.c.h.b16 %v138
    %v375 = vunpack.c.l.b16 %v139
    %v376 = vunpack.c.h.b16 %v139
    %v377 = vunpack.c.l.b16 %v140
    %v378 = vunpack.c.h.b16 %v140
    %v379 = vunpack.c.l.b16 %v141
    %v380 = vunpack.c.h.b16 %v141
    %v381 = vunpack.c.l.b16 %v142
    %v382 = vunpack.c.h.b16 %v142
    %v383 = vpack.c.b16 %v263, %v255
    %v384 = vpack.c.b16 %v264, %v256
    %v385 = vpack.c.b16 %v265, %v257
    %v386 = vpack.c.b16 %v266, %v258
    %v387 = vpack.c.b16 %v267, %v259
    %v388 = vpack.c.b16 %v268, %v260
    %v389 = vpack.c.b16 %v269, %v261
    %v390 = vpack.c.b16 %v270, %v262
    %v391 = vpack.c.b16 %v279, %v271
    %v392 = vpack.c.b16 %v280, %v272
    %v393 = vpack.c.b16 %v281, %v273
    %v394 = vpack.c.b16 %v282, %v274
    %v395 = vpack.c.b16 %v283, %v275
    %v396 = vpack.c.b16 %v284, %v276
    %v397 = vpack.c.b16 %v285, %v277
    %v398 = vpack.c.b16 %v286, %v278
    %v399 = vpack.c.b16 %v295, %v287
    %v400 = vpack.c.b16 %v296, %v288
    %v401 = vpack.c.b16 %v297, %v289
    %v402 = vpack.c.b16 %v298, %v290
    %v403 = vpack.c.b16 %v299, %v291
    %v404 = vpack.c.b16 %v300, %v292
    %v405 = vpack.c.b16 %v301, %v293
    %v406 = vpack.c.b16 %v302, %v294
    %v407 = vpack.c.b16 %v311, %v303
    %v408 = vpack.c.b16 %v312, %v304
    %v409 = vpack.c.b16 %v313, %v305
    %v410 = vpack.c.b16 %v314, %v306
    %v411 = vpack.c.b16 %v315, %v307
    %v412 = vpack.c.b16 %v316, %v308
    %v413 = vpack.c.b16 %v317, %v309
    %v414 = vpack.c.b16 %v318, %v310
    %v415 = vpack.c.b16 %v327, %v319
    %v416 = vpack.c.b16 %v328, %v320
    %v417 = vpack.c.b16 %v329, %v321
    %v418 = vpack.c.b16 %v330, %v322
    %v419 = vpack.c.b16 %v331, %v323
    %v420 = vpack.c.b16 %v332, %v324
    %v421 = vpack.c.b16 %v333, %v325
    %v422 = vpack.c.b16 %v334, %v326
    %v423 = vpack.c.b16 %v343, %v335
    %v424 = vpack.c.b16 %v344, %v336
    %v425 = vpack.c.b16 %v345, %v337
    %v426 = vpack.c.b16 %v346, %v338
    %v427 = vpack.c.b16 %v347, %v339
    %v428 = vpack.c.b16 %v348, %v340
    %v429 = vpack.c.b16 %v349, %v341
    %v430 = vpack.c.b16 %v350, %v342
    %v431 = vpack.c.b16 %v359, %v351
    %v432 = vpack.c.b16 %v360, %v352
    %v433 = vpack.c.b16 %v361, %v353
    %v434 = vpack.c.b16 %v362, %v354
    %v435 = vpack.c.b16 %v363, %v355
    %v436 = vpack.c.b16 %v364, %v356
    %v437 = vpack.c.b16 %v365, %v357
    %v438 = vpack.c.b16 %v366, %v358
    %v439 = vpack.c.b16 %v375, %v367
    %v440 = vpack.c.b16 %v376, %v368
    %v441 = vpack.c.b16 %v377, %v369
    %v442 = vpack.c.b16 %v378, %v370
    %v443 = vpack.c.b16 %v379, %v371
    %v444 = vpack.c.b16 %v380, %v372
    %v445 = vpack.c.b16 %v381, %v373
    %v446 = vpack.c.b16 %v382, %v374
    %511 = vmatprep.subr.bf16.mxu0 %v384
    %512 = vmatpush1.bf16.msra.mxu0 %v383
    %513 = vmatprep.subr.bf16.mxu0 %v392
    %514 = vmatpush1.bf16.msra.mxu0 %v391
    %515 = vmatprep.subr.bf16.mxu0 %v400
    %516 = vmatpush1.bf16.msra.mxu0 %v399
    %517 = vmatprep.subr.bf16.mxu0 %v408
    %518 = vmatpush1.bf16.msra.mxu0 %v407
    %519 = vmatprep.subr.bf16.mxu0 %v416
    %520 = vmatpush1.bf16.msra.mxu0 %v415
    %521 = vmatprep.subr.bf16.mxu0 %v424
    %522 = vmatpush1.bf16.msra.mxu0 %v423
    %523 = vmatprep.subr.bf16.mxu0 %v432
    %524 = vmatpush1.bf16.msra.mxu0 %v431
    %525 = vmatprep.subr.bf16.mxu0 %v440
    %526 = vmatpush1.bf16.msra.mxu0 %v439
    %527 = vmatprep.subr.bf16.mxu0 0
    %528 = vmatpush1.bf16.msra.mxu0 0
    %529 = vmatprep.subr.bf16.mxu0 0
    %530 = vmatpush1.bf16.msra.mxu0 0
    %531 = vmatprep.subr.bf16.mxu0 0
    %532 = vmatpush1.bf16.msra.mxu0 0
    %533 = vmatprep.subr.bf16.mxu0 0
    %534 = vmatpush1.bf16.msra.mxu0 0
    %535 = vmatprep.subr.bf16.mxu0 0
    %536 = vmatpush1.bf16.msra.mxu0 0
    %537 = vmatprep.subr.bf16.mxu0 0
    %538 = vmatpush1.bf16.msra.mxu0 0
    %539 = vmatprep.subr.bf16.mxu0 0
    %540 = vmatpush1.bf16.msra.mxu0 0
    %541 = vmatprep.subr.bf16.mxu0 0
    %542 = vmatpush1.bf16.msra.mxu0 0
    %543 = vmatprep.mubr.bf16.mxu0 0
    %544 = vmatmul.mubr.bf16.gmra.mrb[0].mxu0 %v175
    %v545 = vpop.f32.mrb[0].mxu0
    %v546 = vadd.f32 0.0, %v545
    %v547 = vpop.f32.mrb[0].mxu0
    %v548 = vadd.f32 0.0, %v547
    %v549 = vpop.f32.mrb[0].mxu0
    %v550 = vadd.f32 0.0, %v549
    %v551 = vpop.f32.mrb[0].mxu0
    %v552 = vadd.f32 0.0, %v551
    %553 = vmatprep.mubr.bf16.mxu0 0
    %554 = vmatmul.mubr.bf16.gmra.mrb[0].mxu0 %v176
    %v555 = vpop.f32.mrb[0].mxu0
    %v556 = vadd.f32 0.0, %v555
    %v557 = vpop.f32.mrb[0].mxu0
    %v558 = vadd.f32 0.0, %v557
    %v559 = vpop.f32.mrb[0].mxu0
    %v560 = vadd.f32 0.0, %v559
    %v561 = vpop.f32.mrb[0].mxu0
    %v562 = vadd.f32 0.0, %v561
    %563 = vmatprep.mubr.bf16.mxu0 0
    %564 = vmatmul.mubr.bf16.gmra.mrb[0].mxu0 %v177
    %v565 = vpop.f32.mrb[0].mxu0
    %v566 = vadd.f32 0.0, %v565
    %v567 = vpop.f32.mrb[0].mxu0
    %v568 = vadd.f32 0.0, %v567
    %v569 = vpop.f32.mrb[0].mxu0
    %v570 = vadd.f32 0.0, %v569
    %v571 = vpop.f32.mrb[0].mxu0
    %v572 = vadd.f32 0.0, %v571
    %573 = vmatprep.mubr.bf16.mxu0 0
    %574 = vmatmul.mubr.bf16.gmra.mrb[0].mxu0 %v178
    %v575 = vpop.f32.mrb[0].mxu0
    %v576 = vadd.f32 0.0, %v575
    %v577 = vpop.f32.mrb[0].mxu0
    %v578 = vadd.f32 0.0, %v577
    %v579 = vpop.f32.mrb[0].mxu0
    %v580 = vadd.f32 0.0, %v579
    %v581 = vpop.f32.mrb[0].mxu0
    %v582 = vadd.f32 0.0, %v581
    %583 = vmatprep.mubr.bf16.mxu0 0
    %584 = vmatmul.mubr.bf16.gmra.mrb[0].mxu0 %v179
    %v585 = vpop.f32.mrb[0].mxu0
    %v586 = vadd.f32 0.0, %v585
    %v587 = vpop.f32.mrb[0].mxu0
    %v588 = vadd.f32 0.0, %v587
    %v589 = vpop.f32.mrb[0].mxu0
    %v590 = vadd.f32 0.0, %v589
    %v591 = vpop.f32.mrb[0].mxu0
    %v592 = vadd.f32 0.0, %v591
    %593 = vmatprep.mubr.bf16.mxu0 0
    %594 = vmatmul.mubr.bf16.gmra.mrb[0].mxu0 %v180
    %v595 = vpop.f32.mrb[0].mxu0
    %v596 = vadd.f32 0.0, %v595
    %v597 = vpop.f32.mrb[0].mxu0
    %v598 = vadd.f32 0.0, %v597
    %v599 = vpop.f32.mrb[0].mxu0
    %v600 = vadd.f32 0.0, %v599
    %v601 = vpop.f32.mrb[0].mxu0
    %v602 = vadd.f32 0.0, %v601
    %603 = vmatprep.mubr.bf16.mxu0 0
    %604 = vmatmul.mubr.bf16.gmra.mrb[0].mxu0 %v181
    %v605 = vpop.f32.mrb[0].mxu0
    %v606 = vadd.f32 0.0, %v605
    %v607 = vpop.f32.mrb[0].mxu0
    %v608 = vadd.f32 0.0, %v607
    %v609 = vpop.f32.mrb[0].mxu0
    %v610 = vadd.f32 0.0, %v609
    %v611 = vpop.f32.mrb[0].mxu0
    %v612 = vadd.f32 0.0, %v611
    %613 = vmatprep.mubr.bf16.mxu0 0
    %614 = vmatmul.mubr.bf16.gmra.mrb[0].mxu0 %v182
    %v615 = vpop.f32.mrb[0].mxu0
    %v616 = vadd.f32 0.0, %v615
    %v617 = vpop.f32.mrb[0].mxu0
    %v618 = vadd.f32 0.0, %v617
    %v619 = vpop.f32.mrb[0].mxu0
    %v620 = vadd.f32 0.0, %v619
    %v621 = vpop.f32.mrb[0].mxu0
    %v622 = vadd.f32 0.0, %v621
    %623 = vdwg.mxu0
    %624 = vmatprep.subr.bf16.mxu0 %v386
    %625 = vmatpush1.bf16.msra.mxu0 %v385
    %626 = vmatprep.subr.bf16.mxu0 %v394
    %627 = vmatpush1.bf16.msra.mxu0 %v393
    %628 = vmatprep.subr.bf16.mxu0 %v402
    %629 = vmatpush1.bf16.msra.mxu0 %v401
    %630 = vmatprep.subr.bf16.mxu0 %v410
    %631 = vmatpush1.bf16.msra.mxu0 %v409
    %632 = vmatprep.subr.bf16.mxu0 %v418
    %633 = vmatpush1.bf16.msra.mxu0 %v417
    %634 = vmatprep.subr.bf16.mxu0 %v426
    %635 = vmatpush1.bf16.msra.mxu0 %v425
    %636 = vmatprep.subr.bf16.mxu0 %v434
    %637 = vmatpush1.bf16.msra.mxu0 %v433
    %638 = vmatprep.subr.bf16.mxu0 %v442
    %639 = vmatpush1.bf16.msra.mxu0 %v441
    %640 = vmatprep.subr.bf16.mxu0 0
    %641 = vmatpush1.bf16.msra.mxu0 0
    %642 = vmatprep.subr.bf16.mxu0 0
    %643 = vmatpush1.bf16.msra.mxu0 0
    %644 = vmatprep.subr.bf16.mxu0 0
    %645 = vmatpush1.bf16.msra.mxu0 0
    %646 = vmatprep.subr.bf16.mxu0 0
    %647 = vmatpush1.bf16.msra.mxu0 0
    %648 = vmatprep.subr.bf16.mxu0 0
    %649 = vmatpush1.bf16.msra.mxu0 0
    %650 = vmatprep.subr.bf16.mxu0 0
    %651 = vmatpush1.bf16.msra.mxu0 0
    %652 = vmatprep.subr.bf16.mxu0 0
    %653 = vmatpush1.bf16.msra.mxu0 0
    %654 = vmatprep.subr.bf16.mxu0 0
    %655 = vmatpush1.bf16.msra.mxu0 0
    %656 = vmatprep.mubr.bf16.mxu0 0
    %657 = vmatmul.mubr.bf16.gmra.mrb[0].mxu0 %v175
    %v658 = vpop.f32.mrb[0].mxu0
    %v659 = vadd.f32 0.0, %v658
    %v660 = vpop.f32.mrb[0].mxu0
    %v661 = vadd.f32 0.0, %v660
    %v662 = vpop.f32.mrb[0].mxu0
    %v663 = vadd.f32 0.0, %v662
    %v664 = vpop.f32.mrb[0].mxu0
    %v665 = vadd.f32 0.0, %v664
    %666 = vmatprep.mubr.bf16.mxu0 0
    %667 = vmatmul.mubr.bf16.gmra.mrb[0].mxu0 %v176
    %v668 = vpop.f32.mrb[0].mxu0
    %v669 = vadd.f32 0.0, %v668
    %v670 = vpop.f32.mrb[0].mxu0
    %v671 = vadd.f32 0.0, %v670
    %v672 = vpop.f32.mrb[0].mxu0
    %v673 = vadd.f32 0.0, %v672
    %v674 = vpop.f32.mrb[0].mxu0
    %v675 = vadd.f32 0.0, %v674
    %676 = vmatprep.mubr.bf16.mxu0 0
    %677 = vmatmul.mubr.bf16.gmra.mrb[0].mxu0 %v177
    %v678 = vpop.f32.mrb[0].mxu0
    %v679 = vadd.f32 0.0, %v678
    %v680 = vpop.f32.mrb[0].mxu0
    %v681 = vadd.f32 0.0, %v680
    %v682 = vpop.f32.mrb[0].mxu0
    %v683 = vadd.f32 0.0, %v682
    %v684 = vpop.f32.mrb[0].mxu0
    %v685 = vadd.f32 0.0, %v684
    %686 = vmatprep.mubr.bf16.mxu0 0
    %687 = vmatmul.mubr.bf16.gmra.mrb[0].mxu0 %v178
    %v688 = vpop.f32.mrb[0].mxu0
    %v689 = vadd.f32 0.0, %v688
    %v690 = vpop.f32.mrb[0].mxu0
    %v691 = vadd.f32 0.0, %v690
    %v692 = vpop.f32.mrb[0].mxu0
    %v693 = vadd.f32 0.0, %v692
    %v694 = vpop.f32.mrb[0].mxu0
    %v695 = vadd.f32 0.0, %v694
    %696 = vmatprep.mubr.bf16.mxu0 0
    %697 = vmatmul.mubr.bf16.gmra.mrb[0].mxu0 %v179
    %v698 = vpop.f32.mrb[0].mxu0
    %v699 = vadd.f32 0.0, %v698
    %v700 = vpop.f32.mrb[0].mxu0
    %v701 = vadd.f32 0.0, %v700
    %v702 = vpop.f32.mrb[0].mxu0
    %v703 = vadd.f32 0.0, %v702
    %v704 = vpop.f32.mrb[0].mxu0
    %v705 = vadd.f32 0.0, %v704
    %706 = vmatprep.mubr.bf16.mxu0 0
    %707 = vmatmul.mubr.bf16.gmra.mrb[0].mxu0 %v180
    %v708 = vpop.f32.mrb[0].mxu0
    %v709 = vadd.f32 0.0, %v708
    %v710 = vpop.f32.mrb[0].mxu0
    %v711 = vadd.f32 0.0, %v710
    %v712 = vpop.f32.mrb[0].mxu0
    %v713 = vadd.f32 0.0, %v712
    %v714 = vpop.f32.mrb[0].mxu0
    %v715 = vadd.f32 0.0, %v714
    %716 = vmatprep.mubr.bf16.mxu0 0
    %717 = vmatmul.mubr.bf16.gmra.mrb[0].mxu0 %v181
    %v718 = vpop.f32.mrb[0].mxu0
    %v719 = vadd.f32 0.0, %v718
    %v720 = vpop.f32.mrb[0].mxu0
    %v721 = vadd.f32 0.0, %v720
    %v722 = vpop.f32.mrb[0].mxu0
    %v723 = vadd.f32 0.0, %v722
    %v724 = vpop.f32.mrb[0].mxu0
    %v725 = vadd.f32 0.0, %v724
    %726 = vmatprep.mubr.bf16.mxu0 0
    %727 = vmatmul.mubr.bf16.gmra.mrb[0].mxu0 %v182
    %v728 = vpop.f32.mrb[0].mxu0
    %v729 = vadd.f32 0.0, %v728
    %v730 = vpop.f32.mrb[0].mxu0
    %v731 = vadd.f32 0.0, %v730
    %v732 = vpop.f32.mrb[0].mxu0
    %v733 = vadd.f32 0.0, %v732
    %v734 = vpop.f32.mrb[0].mxu0
    %v735 = vadd.f32 0.0, %v734
    %736 = vdwg.mxu0
    %737 = vmatprep.subr.bf16.mxu0 %v388
    %738 = vmatpush1.bf16.msra.mxu0 %v387
    %739 = vmatprep.subr.bf16.mxu0 %v396
    %740 = vmatpush1.bf16.msra.mxu0 %v395
    %741 = vmatprep.subr.bf16.mxu0 %v404
    %742 = vmatpush1.bf16.msra.mxu0 %v403
    %743 = vmatprep.subr.bf16.mxu0 %v412
    %744 = vmatpush1.bf16.msra.mxu0 %v411
    %745 = vmatprep.subr.bf16.mxu0 %v420
    %746 = vmatpush1.bf16.msra.mxu0 %v419
    %747 = vmatprep.subr.bf16.mxu0 %v428
    %748 = vmatpush1.bf16.msra.mxu0 %v427
    %749 = vmatprep.subr.bf16.mxu0 %v436
    %750 = vmatpush1.bf16.msra.mxu0 %v435
    %751 = vmatprep.subr.bf16.mxu0 %v444
    %752 = vmatpush1.bf16.msra.mxu0 %v443
    %753 = vmatprep.subr.bf16.mxu0 0
    %754 = vmatpush1.bf16.msra.mxu0 0
    %755 = vmatprep.subr.bf16.mxu0 0
    %756 = vmatpush1.bf16.msra.mxu0 0
    %757 = vmatprep.subr.bf16.mxu0 0
    %758 = vmatpush1.bf16.msra.mxu0 0
    %759 = vmatprep.subr.bf16.mxu0 0
    %760 = vmatpush1.bf16.msra.mxu0 0
    %761 = vmatprep.subr.bf16.mxu0 0
    %762 = vmatpush1.bf16.msra.mxu0 0
    %763 = vmatprep.subr.bf16.mxu0 0
    %764 = vmatpush1.bf16.msra.mxu0 0
    %765 = vmatprep.subr.bf16.mxu0 0
    %766 = vmatpush1.bf16.msra.mxu0 0
    %767 = vmatprep.subr.bf16.mxu0 0
    %768 = vmatpush1.bf16.msra.mxu0 0
    %769 = vmatprep.mubr.bf16.mxu0 0
    %770 = vmatmul.mubr.bf16.gmra.mrb[0].mxu0 %v175
    %v771 = vpop.f32.mrb[0].mxu0
    %v772 = vadd.f32 0.0, %v771
    %v773 = vpop.f32.mrb[0].mxu0
    %v774 = vadd.f32 0.0, %v773
    %v775 = vpop.f32.mrb[0].mxu0
    %v776 = vadd.f32 0.0, %v775
    %v777 = vpop.f32.mrb[0].mxu0
    %v778 = vadd.f32 0.0, %v777
    %779 = vmatprep.mubr.bf16.mxu0 0
    %780 = vmatmul.mubr.bf16.gmra.mrb[0].mxu0 %v176
    %v781 = vpop.f32.mrb[0].mxu0
    %v782 = vadd.f32 0.0, %v781
    %v783 = vpop.f32.mrb[0].mxu0
    %v784 = vadd.f32 0.0, %v783
    %v785 = vpop.f32.mrb[0].mxu0
    %v786 = vadd.f32 0.0, %v785
    %v787 = vpop.f32.mrb[0].mxu0
    %v788 = vadd.f32 0.0, %v787
    %789 = vmatprep.mubr.bf16.mxu0 0
    %790 = vmatmul.mubr.bf16.gmra.mrb[0].mxu0 %v177
    %v791 = vpop.f32.mrb[0].mxu0
    %v792 = vadd.f32 0.0, %v791
    %v793 = vpop.f32.mrb[0].mxu0
    %v794 = vadd.f32 0.0, %v793
    %v795 = vpop.f32.mrb[0].mxu0
    %v796 = vadd.f32 0.0, %v795
    %v797 = vpop.f32.mrb[0].mxu0
    %v798 = vadd.f32 0.0, %v797
    %799 = vmatprep.mubr.bf16.mxu0 0
    %800 = vmatmul.mubr.bf16.gmra.mrb[0].mxu0 %v178
    %v801 = vpop.f32.mrb[0].mxu0
    %v802 = vadd.f32 0.0, %v801
    %v803 = vpop.f32.mrb[0].mxu0
    %v804 = vadd.f32 0.0, %v803
    %v805 = vpop.f32.mrb[0].mxu0
    %v806 = vadd.f32 0.0, %v805
    %v807 = vpop.f32.mrb[0].mxu0
    %v808 = vadd.f32 0.0, %v807
    %809 = vmatprep.mubr.bf16.mxu0 0
    %810 = vmatmul.mubr.bf16.gmra.mrb[0].mxu0 %v179
    %v811 = vpop.f32.mrb[0].mxu0
    %v812 = vadd.f32 0.0, %v811
    %v813 = vpop.f32.mrb[0].mxu0
    %v814 = vadd.f32 0.0, %v813
    %v815 = vpop.f32.mrb[0].mxu0
    %v816 = vadd.f32 0.0, %v815
    %v817 = vpop.f32.mrb[0].mxu0
    %v818 = vadd.f32 0.0, %v817
    %819 = vmatprep.mubr.bf16.mxu0 0
    %820 = vmatmul.mubr.bf16.gmra.mrb[0].mxu0 %v180
    %v821 = vpop.f32.mrb[0].mxu0
    %v822 = vadd.f32 0.0, %v821
    %v823 = vpop.f32.mrb[0].mxu0
    %v824 = vadd.f32 0.0, %v823
    %v825 = vpop.f32.mrb[0].mxu0
    %v826 = vadd.f32 0.0, %v825
    %v827 = vpop.f32.mrb[0].mxu0
    %v828 = vadd.f32 0.0, %v827
    %829 = vmatprep.mubr.bf16.mxu0 0
    %830 = vmatmul.mubr.bf16.gmra.mrb[0].mxu0 %v181
    %v831 = vpop.f32.mrb[0].mxu0
    %v832 = vadd.f32 0.0, %v831
    %v833 = vpop.f32.mrb[0].mxu0
    %v834 = vadd.f32 0.0, %v833
    %v835 = vpop.f32.mrb[0].mxu0
    %v836 = vadd.f32 0.0, %v835
    %v837 = vpop.f32.mrb[0].mxu0
    %v838 = vadd.f32 0.0, %v837
    %839 = vmatprep.mubr.bf16.mxu0 0
    %840 = vmatmul.mubr.bf16.gmra.mrb[0].mxu0 %v182
    %v841 = vpop.f32.mrb[0].mxu0
    %v842 = vadd.f32 0.0, %v841
    %v843 = vpop.f32.mrb[0].mxu0
    %v844 = vadd.f32 0.0, %v843
    %v845 = vpop.f32.mrb[0].mxu0
    %v846 = vadd.f32 0.0, %v845
    %v847 = vpop.f32.mrb[0].mxu0
    %v848 = vadd.f32 0.0, %v847
    %849 = vdwg.mxu0
    %850 = vmatprep.subr.bf16.mxu0 %v390
    %851 = vmatpush1.bf16.msra.mxu0 %v389
    %852 = vmatprep.subr.bf16.mxu0 %v398
    %853 = vmatpush1.bf16.msra.mxu0 %v397
    %854 = vmatprep.subr.bf16.mxu0 %v406
    %855 = vmatpush1.bf16.msra.mxu0 %v405
    %856 = vmatprep.subr.bf16.mxu0 %v414
    %857 = vmatpush1.bf16.msra.mxu0 %v413
    %858 = vmatprep.subr.bf16.mxu0 %v422
    %859 = vmatpush1.bf16.msra.mxu0 %v421
    %860 = vmatprep.subr.bf16.mxu0 %v430
    %861 = vmatpush1.bf16.msra.mxu0 %v429
    %862 = vmatprep.subr.bf16.mxu0 %v438
    %863 = vmatpush1.bf16.msra.mxu0 %v437
    %864 = vmatprep.subr.bf16.mxu0 %v446
    %865 = vmatpush1.bf16.msra.mxu0 %v445
    %866 = vmatprep.subr.bf16.mxu0 0
    %867 = vmatpush1.bf16.msra.mxu0 0
    %868 = vmatprep.subr.bf16.mxu0 0
    %869 = vmatpush1.bf16.msra.mxu0 0
    %870 = vmatprep.subr.bf16.mxu0 0
    %871 = vmatpush1.bf16.msra.mxu0 0
    %872 = vmatprep.subr.bf16.mxu0 0
    %873 = vmatpush1.bf16.msra.mxu0 0
    %874 = vmatprep.subr.bf16.mxu0 0
    %875 = vmatpush1.bf16.msra.mxu0 0
    %876 = vmatprep.subr.bf16.mxu0 0
    %877 = vmatpush1.bf16.msra.mxu0 0
    %878 = vmatprep.subr.bf16.mxu0 0
    %879 = vmatpush1.bf16.msra.mxu0 0
    %880 = vmatprep.subr.bf16.mxu0 0
    %881 = vmatpush1.bf16.msra.mxu0 0
    %882 = vmatprep.mubr.bf16.mxu0 0
    %883 = vmatmul.mubr.bf16.gmra.mrb[0].mxu0 %v175
    %v884 = vpop.f32.mrb[0].mxu0
    %v885 = vadd.f32 0.0, %v884
    %v886 = vpop.f32.mrb[0].mxu0
    %v887 = vadd.f32 0.0, %v886
    %v888 = vpop.f32.mrb[0].mxu0
    %v889 = vadd.f32 0.0, %v888
    %v890 = vpop.f32.mrb[0].mxu0
    %v891 = vadd.f32 0.0, %v890
    %892 = vmatprep.mubr.bf16.mxu0 0
    %893 = vmatmul.mubr.bf16.gmra.mrb[0].mxu0 %v176
    %v894 = vpop.f32.mrb[0].mxu0
    %v895 = vadd.f32 0.0, %v894
    %v896 = vpop.f32.mrb[0].mxu0
    %v897 = vadd.f32 0.0, %v896
    %v898 = vpop.f32.mrb[0].mxu0
    %v899 = vadd.f32 0.0, %v898
    %v900 = vpop.f32.mrb[0].mxu0
    %v901 = vadd.f32 0.0, %v900
    %902 = vmatprep.mubr.bf16.mxu0 0
    %903 = vmatmul.mubr.bf16.gmra.mrb[0].mxu0 %v177
    %v904 = vpop.f32.mrb[0].mxu0
    %v905 = vadd.f32 0.0, %v904
    %v906 = vpop.f32.mrb[0].mxu0
    %v907 = vadd.f32 0.0, %v906
    %v908 = vpop.f32.mrb[0].mxu0
    %v909 = vadd.f32 0.0, %v908
    %v910 = vpop.f32.mrb[0].mxu0
    %v911 = vadd.f32 0.0, %v910
    %912 = vmatprep.mubr.bf16.mxu0 0
    %913 = vmatmul.mubr.bf16.gmra.mrb[0].mxu0 %v178
    %v914 = vpop.f32.mrb[0].mxu0
    %v915 = vadd.f32 0.0, %v914
    %v916 = vpop.f32.mrb[0].mxu0
    %v917 = vadd.f32 0.0, %v916
    %v918 = vpop.f32.mrb[0].mxu0
    %v919 = vadd.f32 0.0, %v918
    %v920 = vpop.f32.mrb[0].mxu0
    %v921 = vadd.f32 0.0, %v920
    %922 = vmatprep.mubr.bf16.mxu0 0
    %923 = vmatmul.mubr.bf16.gmra.mrb[0].mxu0 %v179
    %v924 = vpop.f32.mrb[0].mxu0
    %v925 = vadd.f32 0.0, %v924
    %v926 = vpop.f32.mrb[0].mxu0
    %v927 = vadd.f32 0.0, %v926
    %v928 = vpop.f32.mrb[0].mxu0
    %v929 = vadd.f32 0.0, %v928
    %v930 = vpop.f32.mrb[0].mxu0
    %v931 = vadd.f32 0.0, %v930
    %932 = vmatprep.mubr.bf16.mxu0 0
    %933 = vmatmul.mubr.bf16.gmra.mrb[0].mxu0 %v180
    %v934 = vpop.f32.mrb[0].mxu0
    %v935 = vadd.f32 0.0, %v934
    %v936 = vpop.f32.mrb[0].mxu0
    %v937 = vadd.f32 0.0, %v936
    %v938 = vpop.f32.mrb[0].mxu0
    %v939 = vadd.f32 0.0, %v938
    %v940 = vpop.f32.mrb[0].mxu0
    %v941 = vadd.f32 0.0, %v940
    %942 = vmatprep.mubr.bf16.mxu0 0
    %943 = vmatmul.mubr.bf16.gmra.mrb[0].mxu0 %v181
    %v944 = vpop.f32.mrb[0].mxu0
    %v945 = vadd.f32 0.0, %v944
    %v946 = vpop.f32.mrb[0].mxu0
    %v947 = vadd.f32 0.0, %v946
    %v948 = vpop.f32.mrb[0].mxu0
    %v949 = vadd.f32 0.0, %v948
    %v950 = vpop.f32.mrb[0].mxu0
    %v951 = vadd.f32 0.0, %v950
    %952 = vmatprep.mubr.bf16.mxu0 0
    %953 = vmatmul.mubr.bf16.gmra.mrb[0].mxu0 %v182
    %v954 = vpop.f32.mrb[0].mxu0
    %v955 = vadd.f32 0.0, %v954
    %v956 = vpop.f32.mrb[0].mxu0
    %v957 = vadd.f32 0.0, %v956
    %v958 = vpop.f32.mrb[0].mxu0
    %v959 = vadd.f32 0.0, %v958
    %v960 = vpop.f32.mrb[0].mxu0
    %v961 = vadd.f32 0.0, %v960
    %962 = vdwg.mxu0
    %v963 = vxor.u32 %v546, 2147483648
    %v964 = vxor.u32 %v548, 2147483648
    %v965 = vxor.u32 %v659, 2147483648
    %v966 = vxor.u32 %v661, 2147483648
    %v967 = vxor.u32 %v550, 2147483648
    %v968 = vxor.u32 %v552, 2147483648
    %v969 = vxor.u32 %v663, 2147483648
    %v970 = vxor.u32 %v665, 2147483648
    %v971 = vxor.u32 %v556, 2147483648
    %v972 = vxor.u32 %v558, 2147483648
    %v973 = vxor.u32 %v669, 2147483648
    %v974 = vxor.u32 %v671, 2147483648
    %v975 = vxor.u32 %v560, 2147483648
    %v976 = vxor.u32 %v562, 2147483648
    %v977 = vxor.u32 %v673, 2147483648
    %v978 = vxor.u32 %v675, 2147483648
    %v979 = vxor.u32 %v566, 2147483648
    %v980 = vxor.u32 %v568, 2147483648
    %v981 = vxor.u32 %v679, 2147483648
    %v982 = vxor.u32 %v681, 2147483648
    %v983 = vxor.u32 %v570, 2147483648
    %v984 = vxor.u32 %v572, 2147483648
    %v985 = vxor.u32 %v683, 2147483648
    %v986 = vxor.u32 %v685, 2147483648
    %v987 = vxor.u32 %v576, 2147483648
    %v988 = vxor.u32 %v578, 2147483648
    %v989 = vxor.u32 %v689, 2147483648
    %v990 = vxor.u32 %v691, 2147483648
    %v991 = vxor.u32 %v580, 2147483648
    %v992 = vxor.u32 %v582, 2147483648
    %v993 = vxor.u32 %v693, 2147483648
    %v994 = vxor.u32 %v695, 2147483648
    %v995 = vxor.u32 %v586, 2147483648
    %v996 = vxor.u32 %v588, 2147483648
    %v997 = vxor.u32 %v699, 2147483648
    %v998 = vxor.u32 %v701, 2147483648
    %v999 = vxor.u32 %v590, 2147483648
    %v1000 = vxor.u32 %v592, 2147483648
    %v1001 = vxor.u32 %v703, 2147483648
    %v1002 = vxor.u32 %v705, 2147483648
    %v1003 = vxor.u32 %v596, 2147483648
    %v1004 = vxor.u32 %v598, 2147483648
    %v1005 = vxor.u32 %v709, 2147483648
    %v1006 = vxor.u32 %v711, 2147483648
    %v1007 = vxor.u32 %v600, 2147483648
    %v1008 = vxor.u32 %v602, 2147483648
    %v1009 = vxor.u32 %v713, 2147483648
    %v1010 = vxor.u32 %v715, 2147483648
    %v1011 = vxor.u32 %v606, 2147483648
    %v1012 = vxor.u32 %v608, 2147483648
    %v1013 = vxor.u32 %v719, 2147483648
    %v1014 = vxor.u32 %v721, 2147483648
    %v1015 = vxor.u32 %v610, 2147483648
    %v1016 = vxor.u32 %v612, 2147483648
    %v1017 = vxor.u32 %v723, 2147483648
    %v1018 = vxor.u32 %v725, 2147483648
    %v1019 = vxor.u32 %v616, 2147483648
    %v1020 = vxor.u32 %v618, 2147483648
    %v1021 = vxor.u32 %v729, 2147483648
    %v1022 = vxor.u32 %v731, 2147483648
    %v1023 = vxor.u32 %v620, 2147483648
    %v1024 = vxor.u32 %v622, 2147483648
    %v1025 = vxor.u32 %v733, 2147483648
    %v1026 = vxor.u32 %v735, 2147483648
    %v1027 = vmul.f32 %v963, 1.442695
    %v1028 = vpow.pop %v1027
    %v1029 = vmul.f32 %v964, 1.442695
    %v1030 = vpow.pop %v1029
    %v1031 = vmul.f32 %v965, 1.442695
    %v1032 = vpow.pop %v1031
    %v1033 = vmul.f32 %v966, 1.442695
    %v1034 = vpow.pop %v1033
    %v1035 = vmul.f32 %v967, 1.442695
    %v1036 = vpow.pop %v1035
    %v1037 = vmul.f32 %v968, 1.442695
    %v1038 = vpow.pop %v1037
    %v1039 = vmul.f32 %v969, 1.442695
    %v1040 = vpow.pop %v1039
    %v1041 = vmul.f32 %v970, 1.442695
    %v1042 = vpow.pop %v1041
    %v1043 = vmul.f32 %v971, 1.442695
    %v1044 = vpow.pop %v1043
    %v1045 = vmul.f32 %v972, 1.442695
    %v1046 = vpow.pop %v1045
    %v1047 = vmul.f32 %v973, 1.442695
    %v1048 = vpow.pop %v1047
    %v1049 = vmul.f32 %v974, 1.442695
    %v1050 = vpow.pop %v1049
    %v1051 = vmul.f32 %v975, 1.442695
    %v1052 = vpow.pop %v1051
    %v1053 = vmul.f32 %v976, 1.442695
    %v1054 = vpow.pop %v1053
    %v1055 = vmul.f32 %v977, 1.442695
    %v1056 = vpow.pop %v1055
    %v1057 = vmul.f32 %v978, 1.442695
    %v1058 = vpow.pop %v1057
    %v1059 = vmul.f32 %v979, 1.442695
    %v1060 = vpow.pop %v1059
    %v1061 = vmul.f32 %v980, 1.442695
    %v1062 = vpow.pop %v1061
    %v1063 = vmul.f32 %v981, 1.442695
    %v1064 = vpow.pop %v1063
    %v1065 = vmul.f32 %v982, 1.442695
    %v1066 = vpow.pop %v1065
    %v1067 = vmul.f32 %v983, 1.442695
    %v1068 = vpow.pop %v1067
    %v1069 = vmul.f32 %v984, 1.442695
    %v1070 = vpow.pop %v1069
    %v1071 = vmul.f32 %v985, 1.442695
    %v1072 = vpow.pop %v1071
    %v1073 = vmul.f32 %v986, 1.442695
    %v1074 = vpow.pop %v1073
    %v1075 = vmul.f32 %v987, 1.442695
    %v1076 = vpow.pop %v1075
    %v1077 = vmul.f32 %v988, 1.442695
    %v1078 = vpow.pop %v1077
    %v1079 = vmul.f32 %v989, 1.442695
    %v1080 = vpow.pop %v1079
    %v1081 = vmul.f32 %v990, 1.442695
    %v1082 = vpow.pop %v1081
    %v1083 = vmul.f32 %v991, 1.442695
    %v1084 = vpow.pop %v1083
    %v1085 = vmul.f32 %v992, 1.442695
    %v1086 = vpow.pop %v1085
    %v1087 = vmul.f32 %v993, 1.442695
    %v1088 = vpow.pop %v1087
    %v1089 = vmul.f32 %v994, 1.442695
    %v1090 = vpow.pop %v1089
    %v1091 = vmul.f32 %v995, 1.442695
    %v1092 = vpow.pop %v1091
    %v1093 = vmul.f32 %v996, 1.442695
    %v1094 = vpow.pop %v1093
    %v1095 = vmul.f32 %v997, 1.442695
    %v1096 = vpow.pop %v1095
    %v1097 = vmul.f32 %v998, 1.442695
    %v1098 = vpow.pop %v1097
    %v1099 = vmul.f32 %v999, 1.442695
    %v1100 = vpow.pop %v1099
    %v1101 = vmul.f32 %v1000, 1.442695
    %v1102 = vpow.pop %v1101
    %v1103 = vmul.f32 %v1001, 1.442695
    %v1104 = vpow.pop %v1103
    %v1105 = vmul.f32 %v1002, 1.442695
    %v1106 = vpow.pop %v1105
    %v1107 = vmul.f32 %v1003, 1.442695
    %v1108 = vpow.pop %v1107
    %v1109 = vmul.f32 %v1004, 1.442695
    %v1110 = vpow.pop %v1109
    %v1111 = vmul.f32 %v1005, 1.442695
    %v1112 = vpow.pop %v1111
    %v1113 = vmul.f32 %v1006, 1.442695
    %v1114 = vpow.pop %v1113
    %v1115 = vmul.f32 %v1007, 1.442695
    %v1116 = vpow.pop %v1115
    %v1117 = vmul.f32 %v1008, 1.442695
    %v1118 = vpow.pop %v1117
    %v1119 = vmul.f32 %v1009, 1.442695
    %v1120 = vpow.pop %v1119
    %v1121 = vmul.f32 %v1010, 1.442695
    %v1122 = vpow.pop %v1121
    %v1123 = vmul.f32 %v1011, 1.442695
    %v1124 = vpow.pop %v1123
    %v1125 = vmul.f32 %v1012, 1.442695
    %v1126 = vpow.pop %v1125
    %v1127 = vmul.f32 %v1013, 1.442695
    %v1128 = vpow.pop %v1127
    %v1129 = vmul.f32 %v1014, 1.442695
    %v1130 = vpow.pop %v1129
    %v1131 = vmul.f32 %v1015, 1.442695
    %v1132 = vpow.pop %v1131
    %v1133 = vmul.f32 %v1016, 1.442695
    %v1134 = vpow.pop %v1133
    %v1135 = vmul.f32 %v1017, 1.442695
    %v1136 = vpow.pop %v1135
    %v1137 = vmul.f32 %v1018, 1.442695
    %v1138 = vpow.pop %v1137
    %v1139 = vmul.f32 %v1019, 1.442695
    %v1140 = vpow.pop %v1139
    %v1141 = vmul.f32 %v1020, 1.442695
    %v1142 = vpow.pop %v1141
    %v1143 = vmul.f32 %v1021, 1.442695
    %v1144 = vpow.pop %v1143
    %v1145 = vmul.f32 %v1022, 1.442695
    %v1146 = vpow.pop %v1145
    %v1147 = vmul.f32 %v1023, 1.442695
    %v1148 = vpow.pop %v1147
    %v1149 = vmul.f32 %v1024, 1.442695
    %v1150 = vpow.pop %v1149
    %v1151 = vmul.f32 %v1025, 1.442695
    %v1152 = vpow.pop %v1151
    %v1153 = vmul.f32 %v1026, 1.442695
    %v1154 = vpow.pop %v1153
    %v1155 = vadd.f32 %v1028, 1.0
    %v1156 = vadd.f32 %v1030, 1.0
    %v1157 = vadd.f32 %v1032, 1.0
    %v1158 = vadd.f32 %v1034, 1.0
    %v1159 = vadd.f32 %v1036, 1.0
    %v1160 = vadd.f32 %v1038, 1.0
    %v1161 = vadd.f32 %v1040, 1.0
    %v1162 = vadd.f32 %v1042, 1.0
    %v1163 = vadd.f32 %v1044, 1.0
    %v1164 = vadd.f32 %v1046, 1.0
    %v1165 = vadd.f32 %v1048, 1.0
    %v1166 = vadd.f32 %v1050, 1.0
    %v1167 = vadd.f32 %v1052, 1.0
    %v1168 = vadd.f32 %v1054, 1.0
    %v1169 = vadd.f32 %v1056, 1.0
    %v1170 = vadd.f32 %v1058, 1.0
    %v1171 = vadd.f32 %v1060, 1.0
    %v1172 = vadd.f32 %v1062, 1.0
    %v1173 = vadd.f32 %v1064, 1.0
    %v1174 = vadd.f32 %v1066, 1.0
    %v1175 = vadd.f32 %v1068, 1.0
    %v1176 = vadd.f32 %v1070, 1.0
    %v1177 = vadd.f32 %v1072, 1.0
    %v1178 = vadd.f32 %v1074, 1.0
    %v1179 = vadd.f32 %v1076, 1.0
    %v1180 = vadd.f32 %v1078, 1.0
    %v1181 = vadd.f32 %v1080, 1.0
    %v1182 = vadd.f32 %v1082, 1.0
    %v1183 = vadd.f32 %v1084, 1.0
    %v1184 = vadd.f32 %v1086, 1.0
    %v1185 = vadd.f32 %v1088, 1.0
    %v1186 = vadd.f32 %v1090, 1.0
    %v1187 = vadd.f32 %v1092, 1.0
    %v1188 = vadd.f32 %v1094, 1.0
    %v1189 = vadd.f32 %v1096, 1.0
    %v1190 = vadd.f32 %v1098, 1.0
    %v1191 = vadd.f32 %v1100, 1.0
    %v1192 = vadd.f32 %v1102, 1.0
    %v1193 = vadd.f32 %v1104, 1.0
    %v1194 = vadd.f32 %v1106, 1.0
    %v1195 = vadd.f32 %v1108, 1.0
    %v1196 = vadd.f32 %v1110, 1.0
    %v1197 = vadd.f32 %v1112, 1.0
    %v1198 = vadd.f32 %v1114, 1.0
    %v1199 = vadd.f32 %v1116, 1.0
    %v1200 = vadd.f32 %v1118, 1.0
    %v1201 = vadd.f32 %v1120, 1.0
    %v1202 = vadd.f32 %v1122, 1.0
    %v1203 = vadd.f32 %v1124, 1.0
    %v1204 = vadd.f32 %v1126, 1.0
    %v1205 = vadd.f32 %v1128, 1.0
    %v1206 = vadd.f32 %v1130, 1.0
    %v1207 = vadd.f32 %v1132, 1.0
    %v1208 = vadd.f32 %v1134, 1.0
    %v1209 = vadd.f32 %v1136, 1.0
    %v1210 = vadd.f32 %v1138, 1.0
    %v1211 = vadd.f32 %v1140, 1.0
    %v1212 = vadd.f32 %v1142, 1.0
    %v1213 = vadd.f32 %v1144, 1.0
    %v1214 = vadd.f32 %v1146, 1.0
    %v1215 = vadd.f32 %v1148, 1.0
    %v1216 = vadd.f32 %v1150, 1.0
    %v1217 = vadd.f32 %v1152, 1.0
    %v1218 = vadd.f32 %v1154, 1.0
    %v1219 = vrcp.pop %v1155
    %v1220 = vmul.f32 1.0, %v1219
    %v1221 = vrcp.pop %v1156
    %v1222 = vmul.f32 1.0, %v1221
    %v1223 = vrcp.pop %v1157
    %v1224 = vmul.f32 1.0, %v1223
    %v1225 = vrcp.pop %v1158
    %v1226 = vmul.f32 1.0, %v1225
    %v1227 = vrcp.pop %v1159
    %v1228 = vmul.f32 1.0, %v1227
    %v1229 = vrcp.pop %v1160
    %v1230 = vmul.f32 1.0, %v1229
    %v1231 = vrcp.pop %v1161
    %v1232 = vmul.f32 1.0, %v1231
    %v1233 = vrcp.pop %v1162
    %v1234 = vmul.f32 1.0, %v1233
    %v1235 = vrcp.pop %v1163
    %v1236 = vmul.f32 1.0, %v1235
    %v1237 = vrcp.pop %v1164
    %v1238 = vmul.f32 1.0, %v1237
    %v1239 = vrcp.pop %v1165
    %v1240 = vmul.f32 1.0, %v1239
    %v1241 = vrcp.pop %v1166
    %v1242 = vmul.f32 1.0, %v1241
    %v1243 = vrcp.pop %v1167
    %v1244 = vmul.f32 1.0, %v1243
    %v1245 = vrcp.pop %v1168
    %v1246 = vmul.f32 1.0, %v1245
    %v1247 = vrcp.pop %v1169
    %v1248 = vmul.f32 1.0, %v1247
    %v1249 = vrcp.pop %v1170
    %v1250 = vmul.f32 1.0, %v1249
    %v1251 = vrcp.pop %v1171
    %v1252 = vmul.f32 1.0, %v1251
    %v1253 = vrcp.pop %v1172
    %v1254 = vmul.f32 1.0, %v1253
    %v1255 = vrcp.pop %v1173
    %v1256 = vmul.f32 1.0, %v1255
    %v1257 = vrcp.pop %v1174
    %v1258 = vmul.f32 1.0, %v1257
    %v1259 = vrcp.pop %v1175
    %v1260 = vmul.f32 1.0, %v1259
    %v1261 = vrcp.pop %v1176
    %v1262 = vmul.f32 1.0, %v1261
    %v1263 = vrcp.pop %v1177
    %v1264 = vmul.f32 1.0, %v1263
    %v1265 = vrcp.pop %v1178
    %v1266 = vmul.f32 1.0, %v1265
    %v1267 = vrcp.pop %v1179
    %v1268 = vmul.f32 1.0, %v1267
    %v1269 = vrcp.pop %v1180
    %v1270 = vmul.f32 1.0, %v1269
    %v1271 = vrcp.pop %v1181
    %v1272 = vmul.f32 1.0, %v1271
    %v1273 = vrcp.pop %v1182
    %v1274 = vmul.f32 1.0, %v1273
    %v1275 = vrcp.pop %v1183
    %v1276 = vmul.f32 1.0, %v1275
    %v1277 = vrcp.pop %v1184
    %v1278 = vmul.f32 1.0, %v1277
    %v1279 = vrcp.pop %v1185
    %v1280 = vmul.f32 1.0, %v1279
    %v1281 = vrcp.pop %v1186
    %v1282 = vmul.f32 1.0, %v1281
    %v1283 = vrcp.pop %v1187
    %v1284 = vmul.f32 1.0, %v1283
    %v1285 = vrcp.pop %v1188
    %v1286 = vmul.f32 1.0, %v1285
    %v1287 = vrcp.pop %v1189
    %v1288 = vmul.f32 1.0, %v1287
    %v1289 = vrcp.pop %v1190
    %v1290 = vmul.f32 1.0, %v1289
    %v1291 = vrcp.pop %v1191
    %v1292 = vmul.f32 1.0, %v1291
    %v1293 = vrcp.pop %v1192
    %v1294 = vmul.f32 1.0, %v1293
    %v1295 = vrcp.pop %v1193
    %v1296 = vmul.f32 1.0, %v1295
    %v1297 = vrcp.pop %v1194
    %v1298 = vmul.f32 1.0, %v1297
    %v1299 = vrcp.pop %v1195
    %v1300 = vmul.f32 1.0, %v1299
    %v1301 = vrcp.pop %v1196
    %v1302 = vmul.f32 1.0, %v1301
    %v1303 = vrcp.pop %v1197
    %v1304 = vmul.f32 1.0, %v1303
    %v1305 = vrcp.pop %v1198
    %v1306 = vmul.f32 1.0, %v1305
    %v1307 = vrcp.pop %v1199
    %v1308 = vmul.f32 1.0, %v1307
    %v1309 = vrcp.pop %v1200
    %v1310 = vmul.f32 1.0, %v1309
    %v1311 = vrcp.pop %v1201
    %v1312 = vmul.f32 1.0, %v1311
    %v1313 = vrcp.pop %v1202
    %v1314 = vmul.f32 1.0, %v1313
    %v1315 = vrcp.pop %v1203
    %v1316 = vmul.f32 1.0, %v1315
    %v1317 = vrcp.pop %v1204
    %v1318 = vmul.f32 1.0, %v1317
    %v1319 = vrcp.pop %v1205
    %v1320 = vmul.f32 1.0, %v1319
    %v1321 = vrcp.pop %v1206
    %v1322 = vmul.f32 1.0, %v1321
    %v1323 = vrcp.pop %v1207
    %v1324 = vmul.f32 1.0, %v1323
    %v1325 = vrcp.pop %v1208
    %v1326 = vmul.f32 1.0, %v1325
    %v1327 = vrcp.pop %v1209
    %v1328 = vmul.f32 1.0, %v1327
    %v1329 = vrcp.pop %v1210
    %v1330 = vmul.f32 1.0, %v1329
    %v1331 = vrcp.pop %v1211
    %v1332 = vmul.f32 1.0, %v1331
    %v1333 = vrcp.pop %v1212
    %v1334 = vmul.f32 1.0, %v1333
    %v1335 = vrcp.pop %v1213
    %v1336 = vmul.f32 1.0, %v1335
    %v1337 = vrcp.pop %v1214
    %v1338 = vmul.f32 1.0, %v1337
    %v1339 = vrcp.pop %v1215
    %v1340 = vmul.f32 1.0, %v1339
    %v1341 = vrcp.pop %v1216
    %v1342 = vmul.f32 1.0, %v1341
    %v1343 = vrcp.pop %v1217
    %v1344 = vmul.f32 1.0, %v1343
    %v1345 = vrcp.pop %v1218
    %v1346 = vmul.f32 1.0, %v1345
    %v1347 = vmul.f32 %v546, %v1220
    %v1348 = vmul.f32 %v548, %v1222
    %v1349 = vmul.f32 %v659, %v1224
    %v1350 = vmul.f32 %v661, %v1226
    %v1351 = vmul.f32 %v550, %v1228
    %v1352 = vmul.f32 %v552, %v1230
    %v1353 = vmul.f32 %v663, %v1232
    %v1354 = vmul.f32 %v665, %v1234
    %v1355 = vmul.f32 %v556, %v1236
    %v1356 = vmul.f32 %v558, %v1238
    %v1357 = vmul.f32 %v669, %v1240
    %v1358 = vmul.f32 %v671, %v1242
    %v1359 = vmul.f32 %v560, %v1244
    %v1360 = vmul.f32 %v562, %v1246
    %v1361 = vmul.f32 %v673, %v1248
    %v1362 = vmul.f32 %v675, %v1250
    %v1363 = vmul.f32 %v566, %v1252
    %v1364 = vmul.f32 %v568, %v1254
    %v1365 = vmul.f32 %v679, %v1256
    %v1366 = vmul.f32 %v681, %v1258
    %v1367 = vmul.f32 %v570, %v1260
    %v1368 = vmul.f32 %v572, %v1262
    %v1369 = vmul.f32 %v683, %v1264
    %v1370 = vmul.f32 %v685, %v1266
    %v1371 = vmul.f32 %v576, %v1268
    %v1372 = vmul.f32 %v578, %v1270
    %v1373 = vmul.f32 %v689, %v1272
    %v1374 = vmul.f32 %v691, %v1274
    %v1375 = vmul.f32 %v580, %v1276
    %v1376 = vmul.f32 %v582, %v1278
    %v1377 = vmul.f32 %v693, %v1280
    %v1378 = vmul.f32 %v695, %v1282
    %v1379 = vmul.f32 %v586, %v1284
    %v1380 = vmul.f32 %v588, %v1286
    %v1381 = vmul.f32 %v699, %v1288
    %v1382 = vmul.f32 %v701, %v1290
    %v1383 = vmul.f32 %v590, %v1292
    %v1384 = vmul.f32 %v592, %v1294
    %v1385 = vmul.f32 %v703, %v1296
    %v1386 = vmul.f32 %v705, %v1298
    %v1387 = vmul.f32 %v596, %v1300
    %v1388 = vmul.f32 %v598, %v1302
    %v1389 = vmul.f32 %v709, %v1304
    %v1390 = vmul.f32 %v711, %v1306
    %v1391 = vmul.f32 %v600, %v1308
    %v1392 = vmul.f32 %v602, %v1310
    %v1393 = vmul.f32 %v713, %v1312
    %v1394 = vmul.f32 %v715, %v1314
    %v1395 = vmul.f32 %v606, %v1316
    %v1396 = vmul.f32 %v608, %v1318
    %v1397 = vmul.f32 %v719, %v1320
    %v1398 = vmul.f32 %v721, %v1322
    %v1399 = vmul.f32 %v610, %v1324
    %v1400 = vmul.f32 %v612, %v1326
    %v1401 = vmul.f32 %v723, %v1328
    %v1402 = vmul.f32 %v725, %v1330
    %v1403 = vmul.f32 %v616, %v1332
    %v1404 = vmul.f32 %v618, %v1334
    %v1405 = vmul.f32 %v729, %v1336
    %v1406 = vmul.f32 %v731, %v1338
    %v1407 = vmul.f32 %v620, %v1340
    %v1408 = vmul.f32 %v622, %v1342
    %v1409 = vmul.f32 %v733, %v1344
    %v1410 = vmul.f32 %v735, %v1346
    %v1411 = vmul.f32 %v1347, %v772
    %v1412 = vmul.f32 %v1348, %v774
    %v1413 = vmul.f32 %v1349, %v885
    %v1414 = vmul.f32 %v1350, %v887
    %v1415 = vmul.f32 %v1351, %v776
    %v1416 = vmul.f32 %v1352, %v778
    %v1417 = vmul.f32 %v1353, %v889
    %v1418 = vmul.f32 %v1354, %v891
    %v1419 = vmul.f32 %v1355, %v782
    %v1420 = vmul.f32 %v1356, %v784
    %v1421 = vmul.f32 %v1357, %v895
    %v1422 = vmul.f32 %v1358, %v897
    %v1423 = vmul.f32 %v1359, %v786
    %v1424 = vmul.f32 %v1360, %v788
    %v1425 = vmul.f32 %v1361, %v899
    %v1426 = vmul.f32 %v1362, %v901
    %v1427 = vmul.f32 %v1363, %v792
    %v1428 = vmul.f32 %v1364, %v794
    %v1429 = vmul.f32 %v1365, %v905
    %v1430 = vmul.f32 %v1366, %v907
    %v1431 = vmul.f32 %v1367, %v796
    %v1432 = vmul.f32 %v1368, %v798
    %v1433 = vmul.f32 %v1369, %v909
    %v1434 = vmul.f32 %v1370, %v911
    %v1435 = vmul.f32 %v1371, %v802
    %v1436 = vmul.f32 %v1372, %v804
    %v1437 = vmul.f32 %v1373, %v915
    %v1438 = vmul.f32 %v1374, %v917
    %v1439 = vmul.f32 %v1375, %v806
    %v1440 = vmul.f32 %v1376, %v808
    %v1441 = vmul.f32 %v1377, %v919
    %v1442 = vmul.f32 %v1378, %v921
    %v1443 = vmul.f32 %v1379, %v812
    %v1444 = vmul.f32 %v1380, %v814
    %v1445 = vmul.f32 %v1381, %v925
    %v1446 = vmul.f32 %v1382, %v927
    %v1447 = vmul.f32 %v1383, %v816
    %v1448 = vmul.f32 %v1384, %v818
    %v1449 = vmul.f32 %v1385, %v929
    %v1450 = vmul.f32 %v1386, %v931
    %v1451 = vmul.f32 %v1387, %v822
    %v1452 = vmul.f32 %v1388, %v824
    %v1453 = vmul.f32 %v1389, %v935
    %v1454 = vmul.f32 %v1390, %v937
    %v1455 = vmul.f32 %v1391, %v826
    %v1456 = vmul.f32 %v1392, %v828
    %v1457 = vmul.f32 %v1393, %v939
    %v1458 = vmul.f32 %v1394, %v941
    %v1459 = vmul.f32 %v1395, %v832
    %v1460 = vmul.f32 %v1396, %v834
    %v1461 = vmul.f32 %v1397, %v945
    %v1462 = vmul.f32 %v1398, %v947
    %v1463 = vmul.f32 %v1399, %v836
    %v1464 = vmul.f32 %v1400, %v838
    %v1465 = vmul.f32 %v1401, %v949
    %v1466 = vmul.f32 %v1402, %v951
    %v1467 = vmul.f32 %v1403, %v842
    %v1468 = vmul.f32 %v1404, %v844
    %v1469 = vmul.f32 %v1405, %v955
    %v1470 = vmul.f32 %v1406, %v957
    %v1471 = vmul.f32 %v1407, %v846
    %v1472 = vmul.f32 %v1408, %v848
    %v1473 = vmul.f32 %v1409, %v959
    %v1474 = vmul.f32 %v1410, %v961
    %v1475 = vld [vmem:[#allocation2] sm:$0xff]
    %v1476 = vld [vmem:[#allocation2 + $0x8] sm:$0xff]
    %v1477 = vld [vmem:[#allocation2 + $0x10] sm:$0xff]
    %v1478 = vld [vmem:[#allocation2 + $0x18] sm:$0xff]
    %v1479 = vld [vmem:[#allocation2 + $0x20] sm:$0xff]
    %v1480 = vld [vmem:[#allocation2 + $0x28] sm:$0xff]
    %v1481 = vld [vmem:[#allocation2 + $0x30] sm:$0xff]
    %v1482 = vld [vmem:[#allocation2 + $0x38] sm:$0xff]
    %v1483 = vld [vmem:[#allocation2 + $0x40] sm:$0xff]
    %v1484 = vld [vmem:[#allocation2 + $0x48] sm:$0xff]
    %v1485 = vld [vmem:[#allocation2 + $0x50] sm:$0xff]
    %v1486 = vld [vmem:[#allocation2 + $0x58] sm:$0xff]
    %v1487 = vld [vmem:[#allocation2 + $0x60] sm:$0xff]
    %v1488 = vld [vmem:[#allocation2 + $0x68] sm:$0xff]
    %v1489 = vld [vmem:[#allocation2 + $0x70] sm:$0xff]
    %v1490 = vld [vmem:[#allocation2 + $0x78] sm:$0xff]
    %v1491 = vpack.c.bf16 %v1415, %v1411
    %v1492 = vpack.c.bf16 %v1416, %v1412
    %v1493 = vpack.c.bf16 %v1417, %v1413
    %v1494 = vpack.c.bf16 %v1418, %v1414
    %v1495 = vpack.c.bf16 %v1423, %v1419
    %v1496 = vpack.c.bf16 %v1424, %v1420
    %v1497 = vpack.c.bf16 %v1425, %v1421
    %v1498 = vpack.c.bf16 %v1426, %v1422
    %v1499 = vpack.c.bf16 %v1431, %v1427
    %v1500 = vpack.c.bf16 %v1432, %v1428
    %v1501 = vpack.c.bf16 %v1433, %v1429
    %v1502 = vpack.c.bf16 %v1434, %v1430
    %v1503 = vpack.c.bf16 %v1439, %v1435
    %v1504 = vpack.c.bf16 %v1440, %v1436
    %v1505 = vpack.c.bf16 %v1441, %v1437
    %v1506 = vpack.c.bf16 %v1442, %v1438
    %v1507 = vpack.c.bf16 %v1447, %v1443
    %v1508 = vpack.c.bf16 %v1448, %v1444
    %v1509 = vpack.c.bf16 %v1449, %v1445
    %v1510 = vpack.c.bf16 %v1450, %v1446
    %v1511 = vpack.c.bf16 %v1455, %v1451
    %v1512 = vpack.c.bf16 %v1456, %v1452
    %v1513 = vpack.c.bf16 %v1457, %v1453
    %v1514 = vpack.c.bf16 %v1458, %v1454
    %v1515 = vpack.c.bf16 %v1463, %v1459
    %v1516 = vpack.c.bf16 %v1464, %v1460
    %v1517 = vpack.c.bf16 %v1465, %v1461
    %v1518 = vpack.c.bf16 %v1466, %v1462
    %v1519 = vpack.c.bf16 %v1471, %v1467
    %v1520 = vpack.c.bf16 %v1472, %v1468
    %v1521 = vpack.c.bf16 %v1473, %v1469
    %v1522 = vpack.c.bf16 %v1474, %v1470
    %v1523 = vld [vmem:[#allocation5] sm:$0xf]
    %v1524 = vld [vmem:[#allocation5 + $0x4] sm:$0xf]
    %v1525 = vld [vmem:[#allocation5 + $0x8] sm:$0xf]
    %v1526 = vld [vmem:[#allocation5 + $0xc] sm:$0xf]
    %v1527 = vld [vmem:[#allocation5 + $0x10] sm:$0xf]
    %v1528 = vld [vmem:[#allocation5 + $0x14] sm:$0xf]
    %v1529 = vld [vmem:[#allocation5 + $0x18] sm:$0xf]
    %v1530 = vld [vmem:[#allocation5 + $0x1c] sm:$0xf]
    %v1531 = vld [vmem:[#allocation5 + $0x20] sm:$0xf]
    %v1532 = vld [vmem:[#allocation5 + $0x24] sm:$0xf]
    %v1533 = vld [vmem:[#allocation5 + $0x28] sm:$0xf]
    %v1534 = vld [vmem:[#allocation5 + $0x2c] sm:$0xf]
    %v1535 = vld [vmem:[#allocation5 + $0x30] sm:$0xf]
    %v1536 = vld [vmem:[#allocation5 + $0x34] sm:$0xf]
    %v1537 = vld [vmem:[#allocation5 + $0x38] sm:$0xf]
    %v1538 = vld [vmem:[#allocation5 + $0x3c] sm:$0xf]
    %v1539 = vld [vmem:[#allocation5 + $0x40] sm:$0xf]
    %v1540 = vld [vmem:[#allocation5 + $0x44] sm:$0xf]
    %v1541 = vld [vmem:[#allocation5 + $0x48] sm:$0xf]
    %v1542 = vld [vmem:[#allocation5 + $0x4c] sm:$0xf]
    %v1543 = vld [vmem:[#allocation5 + $0x50] sm:$0xf]
    %v1544 = vld [vmem:[#allocation5 + $0x54] sm:$0xf]
    %v1545 = vld [vmem:[#allocation5 + $0x58] sm:$0xf]
    %v1546 = vld [vmem:[#allocation5 + $0x5c] sm:$0xf]
    %v1547 = vld [vmem:[#allocation5 + $0x60] sm:$0xf]
    %v1548 = vld [vmem:[#allocation5 + $0x64] sm:$0xf]
    %v1549 = vld [vmem:[#allocation5 + $0x68] sm:$0xf]
    %v1550 = vld [vmem:[#allocation5 + $0x6c] sm:$0xf]
    %v1551 = vld [vmem:[#allocation5 + $0x70] sm:$0xf]
    %v1552 = vld [vmem:[#allocation5 + $0x74] sm:$0xf]
    %v1553 = vld [vmem:[#allocation5 + $0x78] sm:$0xf]
    %v1554 = vld [vmem:[#allocation5 + $0x7c] sm:$0xf]
    %v1555 = vld [vmem:[#allocation5 + $0x80] sm:$0xf]
    %v1556 = vld [vmem:[#allocation5 + $0x84] sm:$0xf]
    %v1557 = vld [vmem:[#allocation5 + $0x88] sm:$0xf]
    %v1558 = vld [vmem:[#allocation5 + $0x8c] sm:$0xf]
    %v1559 = vld [vmem:[#allocation5 + $0x90] sm:$0xf]
    %v1560 = vld [vmem:[#allocation5 + $0x94] sm:$0xf]
    %v1561 = vld [vmem:[#allocation5 + $0x98] sm:$0xf]
    %v1562 = vld [vmem:[#allocation5 + $0x9c] sm:$0xf]
    %v1563 = vld [vmem:[#allocation5 + $0xa0] sm:$0xf]
    %v1564 = vld [vmem:[#allocation5 + $0xa4] sm:$0xf]
    %v1565 = vld [vmem:[#allocation5 + $0xa8] sm:$0xf]
    %v1566 = vld [vmem:[#allocation5 + $0xac] sm:$0xf]
    %v1567 = vld [vmem:[#allocation5 + $0xb0] sm:$0xf]
    %v1568 = vld [vmem:[#allocation5 + $0xb4] sm:$0xf]
    %v1569 = vld [vmem:[#allocation5 + $0xb8] sm:$0xf]
    %v1570 = vld [vmem:[#allocation5 + $0xbc] sm:$0xf]
    %v1571 = vld [vmem:[#allocation5 + $0xc0] sm:$0xf]
    %v1572 = vld [vmem:[#allocation5 + $0xc4] sm:$0xf]
    %v1573 = vld [vmem:[#allocation5 + $0xc8] sm:$0xf]
    %v1574 = vld [vmem:[#allocation5 + $0xcc] sm:$0xf]
    %v1575 = vld [vmem:[#allocation5 + $0xd0] sm:$0xf]
    %v1576 = vld [vmem:[#allocation5 + $0xd4] sm:$0xf]
    %v1577 = vld [vmem:[#allocation5 + $0xd8] sm:$0xf]
    %v1578 = vld [vmem:[#allocation5 + $0xdc] sm:$0xf]
    %v1579 = vld [vmem:[#allocation5 + $0xe0] sm:$0xf]
    %v1580 = vld [vmem:[#allocation5 + $0xe4] sm:$0xf]
    %v1581 = vld [vmem:[#allocation5 + $0xe8] sm:$0xf]
    %v1582 = vld [vmem:[#allocation5 + $0xec] sm:$0xf]
    %v1583 = vld [vmem:[#allocation5 + $0xf0] sm:$0xf]
    %v1584 = vld [vmem:[#allocation5 + $0xf4] sm:$0xf]
    %v1585 = vld [vmem:[#allocation5 + $0xf8] sm:$0xf]
    %v1586 = vld [vmem:[#allocation5 + $0xfc] sm:$0xf]
    %v1651 = vunpack.c.l.b16 %v1523
    %v1652 = vunpack.c.l.b16 %v1524
    %v1653 = vunpack.c.l.b16 %v1525
    %v1654 = vunpack.c.l.b16 %v1526
    %v1655 = vunpack.c.l.b16 %v1527
    %v1656 = vunpack.c.l.b16 %v1528
    %v1657 = vunpack.c.l.b16 %v1529
    %v1658 = vunpack.c.l.b16 %v1530
    %v1659 = vunpack.c.l.b16 %v1531
    %v1660 = vunpack.c.l.b16 %v1532
    %v1661 = vunpack.c.l.b16 %v1533
    %v1662 = vunpack.c.l.b16 %v1534
    %v1663 = vunpack.c.l.b16 %v1535
    %v1664 = vunpack.c.l.b16 %v1536
    %v1665 = vunpack.c.l.b16 %v1537
    %v1666 = vunpack.c.l.b16 %v1538
    %v1667 = vunpack.c.l.b16 %v1539
    %v1668 = vunpack.c.l.b16 %v1540
    %v1669 = vunpack.c.l.b16 %v1541
    %v1670 = vunpack.c.l.b16 %v1542
    %v1671 = vunpack.c.l.b16 %v1543
    %v1672 = vunpack.c.l.b16 %v1544
    %v1673 = vunpack.c.l.b16 %v1545
    %v1674 = vunpack.c.l.b16 %v1546
    %v1675 = vunpack.c.l.b16 %v1547
    %v1676 = vunpack.c.l.b16 %v1548
    %v1677 = vunpack.c.l.b16 %v1549
    %v1678 = vunpack.c.l.b16 %v1550
    %v1679 = vunpack.c.l.b16 %v1551
    %v1680 = vunpack.c.l.b16 %v1552
    %v1681 = vunpack.c.l.b16 %v1553
    %v1682 = vunpack.c.l.b16 %v1554
    %v1683 = vunpack.c.l.b16 %v1555
    %v1684 = vunpack.c.l.b16 %v1556
    %v1685 = vunpack.c.l.b16 %v1557
    %v1686 = vunpack.c.l.b16 %v1558
    %v1687 = vunpack.c.l.b16 %v1559
    %v1688 = vunpack.c.l.b16 %v1560
    %v1689 = vunpack.c.l.b16 %v1561
    %v1690 = vunpack.c.l.b16 %v1562
    %v1691 = vunpack.c.l.b16 %v1563
    %v1692 = vunpack.c.l.b16 %v1564
    %v1693 = vunpack.c.l.b16 %v1565
    %v1694 = vunpack.c.l.b16 %v1566
    %v1695 = vunpack.c.l.b16 %v1567
    %v1696 = vunpack.c.l.b16 %v1568
    %v1697 = vunpack.c.l.b16 %v1569
    %v1698 = vunpack.c.l.b16 %v1570
    %v1699 = vunpack.c.l.b16 %v1571
    %v1700 = vunpack.c.l.b16 %v1572
    %v1701 = vunpack.c.l.b16 %v1573
    %v1702 = vunpack.c.l.b16 %v1574
    %v1703 = vunpack.c.l.b16 %v1575
    %v1704 = vunpack.c.l.b16 %v1576
    %v1705 = vunpack.c.l.b16 %v1577
    %v1706 = vunpack.c.l.b16 %v1578
    %v1707 = vunpack.c.l.b16 %v1579
    %v1708 = vunpack.c.l.b16 %v1580
    %v1709 = vunpack.c.l.b16 %v1581
    %v1710 = vunpack.c.l.b16 %v1582
    %v1711 = vunpack.c.l.b16 %v1583
    %v1712 = vunpack.c.l.b16 %v1584
    %v1713 = vunpack.c.l.b16 %v1585
    %v1714 = vunpack.c.l.b16 %v1586
    %v1715 = vpack.c.b16 %v1652, %v1651
    %v1716 = vpack.c.b16 %v1654, %v1653
    %v1717 = vpack.c.b16 %v1656, %v1655
    %v1718 = vpack.c.b16 %v1658, %v1657
    %v1719 = vpack.c.b16 %v1660, %v1659
    %v1720 = vpack.c.b16 %v1662, %v1661
    %v1721 = vpack.c.b16 %v1664, %v1663
    %v1722 = vpack.c.b16 %v1666, %v1665
    %v1723 = vpack.c.b16 %v1668, %v1667
    %v1724 = vpack.c.b16 %v1670, %v1669
    %v1725 = vpack.c.b16 %v1672, %v1671
    %v1726 = vpack.c.b16 %v1674, %v1673
    %v1727 = vpack.c.b16 %v1676, %v1675
    %v1728 = vpack.c.b16 %v1678, %v1677
    %v1729 = vpack.c.b16 %v1680, %v1679
    %v1730 = vpack.c.b16 %v1682, %v1681
    %v1731 = vpack.c.b16 %v1684, %v1683
    %v1732 = vpack.c.b16 %v1686, %v1685
    %v1733 = vpack.c.b16 %v1688, %v1687
    %v1734 = vpack.c.b16 %v1690, %v1689
    %v1735 = vpack.c.b16 %v1692, %v1691
    %v1736 = vpack.c.b16 %v1694, %v1693
    %v1737 = vpack.c.b16 %v1696, %v1695
    %v1738 = vpack.c.b16 %v1698, %v1697
    %v1739 = vpack.c.b16 %v1700, %v1699
    %v1740 = vpack.c.b16 %v1702, %v1701
    %v1741 = vpack.c.b16 %v1704, %v1703
    %v1742 = vpack.c.b16 %v1706, %v1705
    %v1743 = vpack.c.b16 %v1708, %v1707
    %v1744 = vpack.c.b16 %v1710, %v1709
    %v1745 = vpack.c.b16 %v1712, %v1711
    %v1746 = vpack.c.b16 %v1714, %v1713
    %1779 = vmatprep.subr.bf16.mxu0 0
    %1780 = vmatpush1.bf16.msra.mxu0 %v1715
    %1781 = vmatprep.subr.bf16.mxu0 0
    %1782 = vmatpush1.bf16.msra.mxu0 %v1716
    %1783 = vmatprep.subr.bf16.mxu0 0
    %1784 = vmatpush1.bf16.msra.mxu0 %v1717
    %1785 = vmatprep.subr.bf16.mxu0 0
    %1786 = vmatpush1.bf16.msra.mxu0 %v1718
    %1787 = vmatprep.subr.bf16.mxu0 0
    %1788 = vmatpush1.bf16.msra.mxu0 %v1719
    %1789 = vmatprep.subr.bf16.mxu0 0
    %1790 = vmatpush1.bf16.msra.mxu0 %v1720
    %1791 = vmatprep.subr.bf16.mxu0 0
    %1792 = vmatpush1.bf16.msra.mxu0 %v1721
    %1793 = vmatprep.subr.bf16.mxu0 0
    %1794 = vmatpush1.bf16.msra.mxu0 %v1722
    %1795 = vmatprep.subr.bf16.mxu0 0
    %1796 = vmatpush1.bf16.msra.mxu0 %v1723
    %1797 = vmatprep.subr.bf16.mxu0 0
    %1798 = vmatpush1.bf16.msra.mxu0 %v1724
    %1799 = vmatprep.subr.bf16.mxu0 0
    %1800 = vmatpush1.bf16.msra.mxu0 %v1725
    %1801 = vmatprep.subr.bf16.mxu0 0
    %1802 = vmatpush1.bf16.msra.mxu0 %v1726
    %1803 = vmatprep.subr.bf16.mxu0 0
    %1804 = vmatpush1.bf16.msra.mxu0 %v1727
    %1805 = vmatprep.subr.bf16.mxu0 0
    %1806 = vmatpush1.bf16.msra.mxu0 %v1728
    %1807 = vmatprep.subr.bf16.mxu0 0
    %1808 = vmatpush1.bf16.msra.mxu0 %v1729
    %1809 = vmatprep.subr.bf16.mxu0 0
    %1810 = vmatpush1.bf16.msra.mxu0 %v1730
    %1811 = vmatprep.mubr.bf16.mxu0 %v1492
    %1812 = vmatmul.mubr.bf16.gmra.mrb[0].mxu0 %v1491
    %v1813 = vpop.f32.mrb[0].mxu0
    %v1814 = vadd.f32 0.0, %v1813
    %v1815 = vpop.f32.mrb[0].mxu0
    %v1816 = vpop.f32.mrb[0].mxu0
    %v1817 = vadd.f32 0.0, %v1816
    %v1818 = vpop.f32.mrb[0].mxu0
    %1819 = vmatprep.mubr.bf16.mxu0 %v1496
    %1820 = vmatmul.mubr.bf16.gmra.mrb[0].mxu0 %v1495
    %v1821 = vpop.f32.mrb[0].mxu0
    %v1822 = vadd.f32 0.0, %v1821
    %v1823 = vpop.f32.mrb[0].mxu0
    %v1824 = vpop.f32.mrb[0].mxu0
    %v1825 = vadd.f32 0.0, %v1824
    %v1826 = vpop.f32.mrb[0].mxu0
    %1827 = vmatprep.mubr.bf16.mxu0 %v1500
    %1828 = vmatmul.mubr.bf16.gmra.mrb[0].mxu0 %v1499
    %v1829 = vpop.f32.mrb[0].mxu0
    %v1830 = vadd.f32 0.0, %v1829
    %v1831 = vpop.f32.mrb[0].mxu0
    %v1832 = vpop.f32.mrb[0].mxu0
    %v1833 = vadd.f32 0.0, %v1832
    %v1834 = vpop.f32.mrb[0].mxu0
    %1835 = vmatprep.mubr.bf16.mxu0 %v1504
    %1836 = vmatmul.mubr.bf16.gmra.mrb[0].mxu0 %v1503
    %v1837 = vpop.f32.mrb[0].mxu0
    %v1838 = vadd.f32 0.0, %v1837
    %v1839 = vpop.f32.mrb[0].mxu0
    %v1840 = vpop.f32.mrb[0].mxu0
    %v1841 = vadd.f32 0.0, %v1840
    %v1842 = vpop.f32.mrb[0].mxu0
    %1843 = vmatprep.mubr.bf16.mxu0 %v1508
    %1844 = vmatmul.mubr.bf16.gmra.mrb[0].mxu0 %v1507
    %v1845 = vpop.f32.mrb[0].mxu0
    %v1846 = vadd.f32 0.0, %v1845
    %v1847 = vpop.f32.mrb[0].mxu0
    %v1848 = vpop.f32.mrb[0].mxu0
    %v1849 = vadd.f32 0.0, %v1848
    %v1850 = vpop.f32.mrb[0].mxu0
    %1851 = vmatprep.mubr.bf16.mxu0 %v1512
    %1852 = vmatmul.mubr.bf16.gmra.mrb[0].mxu0 %v1511
    %v1853 = vpop.f32.mrb[0].mxu0
    %v1854 = vadd.f32 0.0, %v1853
    %v1855 = vpop.f32.mrb[0].mxu0
    %v1856 = vpop.f32.mrb[0].mxu0
    %v1857 = vadd.f32 0.0, %v1856
    %v1858 = vpop.f32.mrb[0].mxu0
    %1859 = vmatprep.mubr.bf16.mxu0 %v1516
    %1860 = vmatmul.mubr.bf16.gmra.mrb[0].mxu0 %v1515
    %v1861 = vpop.f32.mrb[0].mxu0
    %v1862 = vadd.f32 0.0, %v1861
    %v1863 = vpop.f32.mrb[0].mxu0
    %v1864 = vpop.f32.mrb[0].mxu0
    %v1865 = vadd.f32 0.0, %v1864
    %v1866 = vpop.f32.mrb[0].mxu0
    %1867 = vmatprep.mubr.bf16.mxu0 %v1520
    %1868 = vmatmul.mubr.bf16.gmra.mrb[0].mxu0 %v1519
    %v1869 = vpop.f32.mrb[0].mxu0
    %v1870 = vadd.f32 0.0, %v1869
    %v1871 = vpop.f32.mrb[0].mxu0
    %v1872 = vpop.f32.mrb[0].mxu0
    %v1873 = vadd.f32 0.0, %v1872
    %v1874 = vpop.f32.mrb[0].mxu0
    %1875 = vdwg.mxu0
    %1876 = vmatprep.subr.bf16.mxu0 0
    %1877 = vmatpush1.bf16.msra.mxu0 %v1731
    %1878 = vmatprep.subr.bf16.mxu0 0
    %1879 = vmatpush1.bf16.msra.mxu0 %v1732
    %1880 = vmatprep.subr.bf16.mxu0 0
    %1881 = vmatpush1.bf16.msra.mxu0 %v1733
    %1882 = vmatprep.subr.bf16.mxu0 0
    %1883 = vmatpush1.bf16.msra.mxu0 %v1734
    %1884 = vmatprep.subr.bf16.mxu0 0
    %1885 = vmatpush1.bf16.msra.mxu0 %v1735
    %1886 = vmatprep.subr.bf16.mxu0 0
    %1887 = vmatpush1.bf16.msra.mxu0 %v1736
    %1888 = vmatprep.subr.bf16.mxu0 0
    %1889 = vmatpush1.bf16.msra.mxu0 %v1737
    %1890 = vmatprep.subr.bf16.mxu0 0
    %1891 = vmatpush1.bf16.msra.mxu0 %v1738
    %1892 = vmatprep.subr.bf16.mxu0 0
    %1893 = vmatpush1.bf16.msra.mxu0 %v1739
    %1894 = vmatprep.subr.bf16.mxu0 0
    %1895 = vmatpush1.bf16.msra.mxu0 %v1740
    %1896 = vmatprep.subr.bf16.mxu0 0
    %1897 = vmatpush1.bf16.msra.mxu0 %v1741
    %1898 = vmatprep.subr.bf16.mxu0 0
    %1899 = vmatpush1.bf16.msra.mxu0 %v1742
    %1900 = vmatprep.subr.bf16.mxu0 0
    %1901 = vmatpush1.bf16.msra.mxu0 %v1743
    %1902 = vmatprep.subr.bf16.mxu0 0
    %1903 = vmatpush1.bf16.msra.mxu0 %v1744
    %1904 = vmatprep.subr.bf16.mxu0 0
    %1905 = vmatpush1.bf16.msra.mxu0 %v1745
    %1906 = vmatprep.subr.bf16.mxu0 0
    %1907 = vmatpush1.bf16.msra.mxu0 %v1746
    %1908 = vmatprep.mubr.bf16.mxu0 %v1494
    %1909 = vmatmul.mubr.bf16.gmra.mrb[0].mxu0 %v1493
    %v1910 = vpop.f32.mrb[0].mxu0
    %v1911 = vadd.f32 %v1814, %v1910
    %v1912 = vpop.f32.mrb[0].mxu0
    %v1913 = vpop.f32.mrb[0].mxu0
    %v1914 = vadd.f32 %v1817, %v1913
    %v1915 = vpop.f32.mrb[0].mxu0
    %1916 = vmatprep.mubr.bf16.mxu0 %v1498
    %1917 = vmatmul.mubr.bf16.gmra.mrb[0].mxu0 %v1497
    %v1918 = vpop.f32.mrb[0].mxu0
    %v1919 = vadd.f32 %v1822, %v1918
    %v1920 = vpop.f32.mrb[0].mxu0
    %v1921 = vpop.f32.mrb[0].mxu0
    %v1922 = vadd.f32 %v1825, %v1921
    %v1923 = vpop.f32.mrb[0].mxu0
    %1924 = vmatprep.mubr.bf16.mxu0 %v1502
    %1925 = vmatmul.mubr.bf16.gmra.mrb[0].mxu0 %v1501
    %v1926 = vpop.f32.mrb[0].mxu0
    %v1927 = vadd.f32 %v1830, %v1926
    %v1928 = vpop.f32.mrb[0].mxu0
    %v1929 = vpop.f32.mrb[0].mxu0
    %v1930 = vadd.f32 %v1833, %v1929
    %v1931 = vpop.f32.mrb[0].mxu0
    %1932 = vmatprep.mubr.bf16.mxu0 %v1506
    %1933 = vmatmul.mubr.bf16.gmra.mrb[0].mxu0 %v1505
    %v1934 = vpop.f32.mrb[0].mxu0
    %v1935 = vadd.f32 %v1838, %v1934
    %v1936 = vpop.f32.mrb[0].mxu0
    %v1937 = vpop.f32.mrb[0].mxu0
    %v1938 = vadd.f32 %v1841, %v1937
    %v1939 = vpop.f32.mrb[0].mxu0
    %1940 = vmatprep.mubr.bf16.mxu0 %v1510
    %1941 = vmatmul.mubr.bf16.gmra.mrb[0].mxu0 %v1509
    %v1942 = vpop.f32.mrb[0].mxu0
    %v1943 = vadd.f32 %v1846, %v1942
    %v1944 = vpop.f32.mrb[0].mxu0
    %v1945 = vpop.f32.mrb[0].mxu0
    %v1946 = vadd.f32 %v1849, %v1945
    %v1947 = vpop.f32.mrb[0].mxu0
    %1948 = vmatprep.mubr.bf16.mxu0 %v1514
    %1949 = vmatmul.mubr.bf16.gmra.mrb[0].mxu0 %v1513
    %v1950 = vpop.f32.mrb[0].mxu0
    %v1951 = vadd.f32 %v1854, %v1950
    %v1952 = vpop.f32.mrb[0].mxu0
    %v1953 = vpop.f32.mrb[0].mxu0
    %v1954 = vadd.f32 %v1857, %v1953
    %v1955 = vpop.f32.mrb[0].mxu0
    %1956 = vmatprep.mubr.bf16.mxu0 %v1518
    %1957 = vmatmul.mubr.bf16.gmra.mrb[0].mxu0 %v1517
    %v1958 = vpop.f32.mrb[0].mxu0
    %v1959 = vadd.f32 %v1862, %v1958
    %v1960 = vpop.f32.mrb[0].mxu0
    %v1961 = vpop.f32.mrb[0].mxu0
    %v1962 = vadd.f32 %v1865, %v1961
    %v1963 = vpop.f32.mrb[0].mxu0
    %1964 = vmatprep.mubr.bf16.mxu0 %v1522
    %1965 = vmatmul.mubr.bf16.gmra.mrb[0].mxu0 %v1521
    %v1966 = vpop.f32.mrb[0].mxu0
    %v1967 = vadd.f32 %v1870, %v1966
    %v1968 = vpop.f32.mrb[0].mxu0
    %v1969 = vpop.f32.mrb[0].mxu0
    %v1970 = vadd.f32 %v1873, %v1969
    %v1971 = vpop.f32.mrb[0].mxu0
    %1972 = vdwg.mxu0
    %v1973 = vadd.f32 %v1475, %v1911
    %v1974 = vadd.f32 %v1476, %v1914
    %v1975 = vadd.f32 %v1477, %v1919
    %v1976 = vadd.f32 %v1478, %v1922
    %v1977 = vadd.f32 %v1479, %v1927
    %v1978 = vadd.f32 %v1480, %v1930
    %v1979 = vadd.f32 %v1481, %v1935
    %v1980 = vadd.f32 %v1482, %v1938
    %v1981 = vadd.f32 %v1483, %v1943
    %v1982 = vadd.f32 %v1484, %v1946
    %v1983 = vadd.f32 %v1485, %v1951
    %v1984 = vadd.f32 %v1486, %v1954
    %v1985 = vadd.f32 %v1487, %v1959
    %v1986 = vadd.f32 %v1488, %v1962
    %v1987 = vadd.f32 %v1489, %v1967
    %v1988 = vadd.f32 %v1490, %v1970
    %1989 = vst [vmem:[#allocation2] sm:$0xff] %v1973
    %1990 = vst [vmem:[#allocation2 + $0x8] sm:$0xff] %v1974
    %1991 = vst [vmem:[#allocation2 + $0x10] sm:$0xff] %v1975
    %1992 = vst [vmem:[#allocation2 + $0x18] sm:$0xff] %v1976
    %1993 = vst [vmem:[#allocation2 + $0x20] sm:$0xff] %v1977
    %1994 = vst [vmem:[#allocation2 + $0x28] sm:$0xff] %v1978
    %1995 = vst [vmem:[#allocation2 + $0x30] sm:$0xff] %v1979
    %1996 = vst [vmem:[#allocation2 + $0x38] sm:$0xff] %v1980
    %1997 = vst [vmem:[#allocation2 + $0x40] sm:$0xff] %v1981
    %1998 = vst [vmem:[#allocation2 + $0x48] sm:$0xff] %v1982
    %1999 = vst [vmem:[#allocation2 + $0x50] sm:$0xff] %v1983
    %2000 = vst [vmem:[#allocation2 + $0x58] sm:$0xff] %v1984
    %2001 = vst [vmem:[#allocation2 + $0x60] sm:$0xff] %v1985
    %2002 = vst [vmem:[#allocation2 + $0x68] sm:$0xff] %v1986
    %2003 = vst [vmem:[#allocation2 + $0x70] sm:$0xff] %v1987
    %2004 = vst [vmem:[#allocation2 + $0x78] sm:$0xff] %v1988
    // Predicated region
    $region26: #{feed_forward.1} parent=1 // pred_check
      %p2005 = pneg %p43
    $region27: #{feed_forward.1} parent=1 // pred_check_branch
      %2007 = sbr.rel (%p2005) target = $region29
    $region28: #{feed_forward.1} parent=1 // pred_region
      %v2008 = vld [vmem:[#allocation2] sm:$0xff]
      %v2009 = vld [vmem:[#allocation2 + $0x8] sm:$0xff]
      %v2010 = vld [vmem:[#allocation2 + $0x10] sm:$0xff]
      %v2011 = vld [vmem:[#allocation2 + $0x18] sm:$0xff]
      %v2012 = vld [vmem:[#allocation2 + $0x20] sm:$0xff]
      %v2013 = vld [vmem:[#allocation2 + $0x28] sm:$0xff]
      %v2014 = vld [vmem:[#allocation2 + $0x30] sm:$0xff]
      %v2015 = vld [vmem:[#allocation2 + $0x38] sm:$0xff]
      %v2016 = vld [vmem:[#allocation2 + $0x40] sm:$0xff]
      %v2017 = vld [vmem:[#allocation2 + $0x48] sm:$0xff]
      %v2018 = vld [vmem:[#allocation2 + $0x50] sm:$0xff]
      %v2019 = vld [vmem:[#allocation2 + $0x58] sm:$0xff]
      %v2020 = vld [vmem:[#allocation2 + $0x60] sm:$0xff]
      %v2021 = vld [vmem:[#allocation2 + $0x68] sm:$0xff]
      %v2022 = vld [vmem:[#allocation2 + $0x70] sm:$0xff]
      %v2023 = vld [vmem:[#allocation2 + $0x78] sm:$0xff]
      %2024 = vst [vmem:[%s3] sm:$0xff] %v2008
      %2025 = vst [vmem:[%s3 + $0x8] sm:$0xff] %v2009
      %2026 = vst [vmem:[%s3 + $0x10] sm:$0xff] %v2010
      %2027 = vst [vmem:[%s3 + $0x18] sm:$0xff] %v2011
      %2028 = vst [vmem:[%s3 + $0x20] sm:$0xff] %v2012
      %2029 = vst [vmem:[%s3 + $0x28] sm:$0xff] %v2013
      %2030 = vst [vmem:[%s3 + $0x30] sm:$0xff] %v2014
      %2031 = vst [vmem:[%s3 + $0x38] sm:$0xff] %v2015
      %2032 = vst [vmem:[%s3 + $0x40] sm:$0xff] %v2016
      %2033 = vst [vmem:[%s3 + $0x48] sm:$0xff] %v2017
      %2034 = vst [vmem:[%s3 + $0x50] sm:$0xff] %v2018
      %2035 = vst [vmem:[%s3 + $0x58] sm:$0xff] %v2019
      %2036 = vst [vmem:[%s3 + $0x60] sm:$0xff] %v2020
      %2037 = vst [vmem:[%s3 + $0x68] sm:$0xff] %v2021
      %2038 = vst [vmem:[%s3 + $0x70] sm:$0xff] %v2022
      %2039 = vst [vmem:[%s3 + $0x78] sm:$0xff] %v2023
    $region29: #{feed_forward.1} parent=1 // pred_fallthru
      _
    // Predicated region
    $region30: #{feed_forward.1} parent=1 // pred_check
      _
    $region31: #{feed_forward.1} parent=1 // pred_check_branch
      %2041 = sbr.rel (0) target = $region33
    $region32: #{feed_forward.1} parent=1 // pred_region
      _
    $region33: #{feed_forward.1} parent=1 // pred_fallthru
      _
    // Predicated region
    $region34: #{feed_forward.1} parent=1 // pred_check
      _
    $region35: #{feed_forward.1} parent=1 // pred_check_branch
      %2043 = sbr.rel (0) target = $region37
    $region36: #{feed_forward.1} parent=1 // pred_region
      _
    $region37: #{feed_forward.1} parent=1 // pred_fallthru
      _
    %2044 = vsyncpa [#allocation4], 1
    %2045 = vsyncpa [#allocation6], 1

</llo_original>
